<compile_context>
chip_gen: v6e
topology: v6e:2x2x1
jax: 0.10.0
libtpu: 0.0.40
codegen_flags: <defaults>
</compile_context>

<pallas_src>
import functools
import math

import jax
import jax.numpy as jnp
import numpy as np
from jax.experimental import pallas as pl
from jax.experimental.pallas import tpu as pltpu


def _ensemble_loss_kernel(preds_ref, tgt_ref, scalars_ref, member_ref,
                          acc_member, acc_msse, acc_nll, acc_div,
                          *, M, D, C, TILE, F8, F_VALID, N_TRUE,
                          uncertainty_weight, diversity_weight, padded):
    """Streams [8, C] lane-dense chunks of the flattened (sample, feature) axis.

    preds_ref : VMEM [M, 8, TILE]  member 'track' predictions (flat lane-dense)
    tgt_ref   : VMEM [8, TILE]     target 'track' (same flat layout)
    scalars_ref : SMEM [4]  (total, mean_prediction, uncertainty, diversity)
    member_ref  : SMEM [M]  per-member base (MSE) losses
    acc_member  : VMEM [M, 8, C]  elementwise per-member SSE accumulators
    acc_msse    : VMEM [8, C]     elementwise ensemble-mean SSE accumulator
    acc_nll     : VMEM [8, C]     masked per-sample NLL accumulator
    acc_div     : VMEM [8, C]     masked per-sample pairwise-distance accumulator
    """
    pid = pl.program_id(0)
    nsteps = pl.num_programs(0)

    @pl.when(pid == 0)
    def _init():
        acc_member[...] = jnp.zeros_like(acc_member)
        acc_msse[...] = jnp.zeros_like(acc_msse)
        acc_nll[...] = jnp.zeros_like(acc_nll)
        acc_div[...] = jnp.zeros_like(acc_div)

    inv_m = 1.0 / M
    inv_m1 = 1.0 / (M - 1)
    n_chunks = TILE // C

    def group_sum(x):
        """Sum over each group of D consecutive lanes (per-sample reduction).

        The completed group sum lands on one lane per group (first or last,
        depending on the roll convention); `group_mask` below selects it.
        """
        if D == 1:
            return x
        acc = x
        if (D & (D - 1)) == 0:                       # power of two -> log tree
            s = 1
            while s < D:
                acc = acc + pltpu.roll(acc, s, 1)
                s *= 2
        else:                                        # general D -> linear chain
            for k in range(1, D):
                acc = acc + pltpu.roll(x, k, 1)
        return acc

    lane_pos = jax.lax.broadcasted_iota(jnp.int32, (8, C), 1)
    if D > 1:
        # 1-vreg probe: detect the roll direction so the group-sum lane
        # selection is correct under either convention.
        probe = pltpu.roll(
            jax.lax.broadcasted_iota(jnp.int32, (8, 128), 1), 1, 1)
        sel = jnp.where(probe[0:1, 0:1] == 127, D - 1, 0)       # [1, 1] int32
        group_mask = (lane_pos % D) == sel
    else:
        group_mask = jnp.ones((8, C), dtype=jnp.bool_)
    if padded:
        sub_pos = jax.lax.broadcasted_iota(jnp.int32, (8, C), 0)

    @pl.loop(0, n_chunks)
    def _chunk(c):
        off = pl.multiple_of(c * C, C)
        t = tgt_ref[:, pl.ds(off, C)].astype(jnp.float32)            # [8, C]

        # -- single fused member sweep: per-member SSE, sum, sum of squares --
        ps = []
        sum_p = jnp.zeros((8, C), jnp.float32)
        sum_p2 = jnp.zeros((8, C), jnp.float32)
        for i in range(M):
            p = preds_ref[i, :, pl.ds(off, C)].astype(jnp.float32)   # [8, C]
            d = p - t
            acc_member[i] = acc_member[i] + d * d
            sum_p = sum_p + p
            sum_p2 = sum_p2 + p * p
            ps.append(p)

        # -- diversity: negative mean pairwise distance (norm over D dims) ---
        if diversity_weight > 0:
            div = jnp.zeros((8, C), jnp.float32)
            for i in range(M):
                for j in range(i + 1, M):
                    dd = ps[i] - ps[j]
                    div = div + jnp.sqrt(jnp.maximum(group_sum(dd * dd), 0.0))
            acc_div[...] = acc_div[...] + jnp.where(group_mask, div, 0.0)

        # -- ensemble-mean loss + NLL calibration ----------------------------
        mean = sum_p * inv_m
        merr = mean - t
        merr2 = merr * merr
        acc_msse[...] = acc_msse[...] + merr2

        # unbiased variance per element from the single sweep (no 2nd sweep)
        var_e = (sum_p2 - sum_p * mean) * inv_m1
        var_s = jnp.maximum(group_sum(var_e), 0.0)       # per-sample sum over D
        err_s = group_sum(merr2)                         # per-sample ||err||^2
        predicted_std = jnp.sqrt(var_s)
        nll = (jnp.log(predicted_std + 1e-6)
               + err_s * pl.reciprocal(2.0 * var_s + 1e-6, approx=True))
        mask = group_mask
        if padded:
            gidx = sub_pos * F8 + (pid * TILE + off + lane_pos)
            mask = jnp.logical_and(mask, gidx < F_VALID)
        acc_nll[...] = acc_nll[...] + jnp.where(mask, nll, 0.0)

    # -- finalize: the only cross-lane reductions and scalar (SMEM) writes ----
    @pl.when(pid == nsteps - 1)
    def _finalize():
        inv_nd = 1.0 / (N_TRUE * D)
        inv_n = 1.0 / N_TRUE
        for i in range(M):
            member_ref[i] = jnp.sum(acc_member[i]) * inv_nd
        mean_loss = jnp.sum(acc_msse[...]) * inv_nd
        nll_mean = jnp.sum(acc_nll[...]) * inv_n
        if diversity_weight > 0:
            n_pairs = M * (M - 1) / 2.0
            diversity = -(jnp.sum(acc_div[...]) * (inv_n / n_pairs))
        else:
            diversity = jnp.float32(0.0)
        scalars_ref[1] = mean_loss
        scalars_ref[2] = nll_mean
        scalars_ref[3] = diversity
        scalars_ref[0] = (mean_loss
                          + uncertainty_weight * nll_mean
                          + diversity_weight * diversity)


def _round_up(x, m):
    return -(-x // m) * m


def ensemble_loss(track_preds, target_track,
                  uncertainty_weight=0.1, diversity_weight=0.05,
                  max_tile_lanes=None, chunk_lanes=None):
    """track_preds: [M, ..., D] stacked member 'track' predictions (f32/bf16);
    target_track: [..., D] ground-truth 'track'.  Returns the loss dict."""
    M = int(track_preds.shape[0])
    if M < 2:
        raise ValueError("EnsembleLoss kernel requires >= 2 ensemble members "
                         "(unbiased variance divides by M-1).")
    D = int(track_preds.shape[-1])
    N = int(np.prod(track_preds.shape[1:-1]))
    F = N * D                                    # true flat element count

    # Lane granularity: sub-chunks / tiles hold whole vregs and whole samples.
    base = 128 * D // math.gcd(128, D)
    if chunk_lanes is None:
        chunk_lanes = 512 if M <= 4 else 256     # bound vreg live ranges
    C = base * max(1, int(chunk_lanes) // base)

    # Generation-aware VMEM budget -> DMA tile size (amortize ~0.35us/step).
    try:
        vmem_cap = int(pltpu.get_tpu_info().vmem_capacity_bytes)
    except Exception:
        vmem_cap = 64 * 1024 * 1024              # conservative (v7x-sized)
    if vmem_cap < (8 << 20):
        vmem_cap = 64 * 1024 * 1024
    vmem_limit = (vmem_cap * 3) // 4             # ~25% headroom
    itembytes = int(np.dtype(track_preds.dtype).itemsize)
    in_budget = vmem_limit // 2                  # double-buffered input blocks
    tile = in_budget // (2 * (M + 1) * 8 * itembytes)
    tile = min(tile, _round_up(_round_up(F, 8) // 8, C))    # not beyond the data
    if max_tile_lanes is not None:
        tile = min(tile, int(max_tile_lanes))
    tile = max(C, (tile // C) * C)

    # Pad N (whole samples, with zeros) so the flat stream reshapes to [8, F8]
    # with F8 a multiple of `tile`.  Zero padding contributes exactly zero to
    # SSE / variance / diversity; the NLL term is masked in-kernel.
    n_quantum = 8 * tile // D
    n_pad = _round_up(N, n_quantum)
    f_pad = n_pad * D
    f8 = f_pad // 8
    grid = (f8 // tile,)
    padded = (n_pad != N)

    preds = track_preds.reshape(M, F)            # free reshapes, no HBM transpose
    tgt = target_track.reshape(F)
    if padded:
        preds = jnp.pad(preds, ((0, 0), (0, f_pad - F)))
        tgt = jnp.pad(tgt, (0, f_pad - F))
    preds = preds.reshape(M, 8, f8)
    tgt = tgt.reshape(8, f8)

    kernel = functools.partial(
        _ensemble_loss_kernel,
        M=M, D=D, C=C, TILE=tile, F8=f8, F_VALID=F, N_TRUE=N,
        uncertainty_weight=float(uncertainty_weight),
        diversity_weight=float(diversity_weight),
        padded=padded,
    )

    # Keep the compiler limit comfortably above what this config actually uses.
    need = (2 * (M + 1) * 8 * tile * itembytes
            + (M + 3) * 8 * C * 4 + (4 << 20))
    vmem_limit = int(max(vmem_limit, need))

    scalars, member = pl.pallas_call(
        kernel,
        out_shape=(
            jax.ShapeDtypeStruct((4,), jnp.float32),
            jax.ShapeDtypeStruct((M,), jnp.float32),
        ),
        grid_spec=pltpu.PrefetchScalarGridSpec(
            num_scalar_prefetch=0,
            grid=grid,
            in_specs=[
                pl.BlockSpec((M, 8, tile), lambda n: (0, 0, n)),
                pl.BlockSpec((8, tile), lambda n: (0, n)),
            ],
            out_specs=(
                pl.BlockSpec(memory_space=pltpu.MemorySpace.SMEM),
                pl.BlockSpec(memory_space=pltpu.MemorySpace.SMEM),
            ),
            scratch_shapes=[
                pltpu.VMEM((M, 8, C), jnp.float32),   # per-member SSE
                pltpu.VMEM((8, C), jnp.float32),      # ensemble-mean SSE
                pltpu.VMEM((8, C), jnp.float32),      # NLL partials
                pltpu.VMEM((8, C), jnp.float32),      # diversity partials
            ],
        ),
        compiler_params=pltpu.CompilerParams(
            dimension_semantics=("arbitrary",),       # sequential streaming reduce
            vmem_limit_bytes=vmem_limit,
        ),
    )(preds, tgt)

    return {
        "total": scalars[0],
        "mean_prediction": scalars[1],
        "uncertainty": scalars[2],
        "diversity": scalars[3],
        "member_losses": member,
    }


def _reference(track_preds, target_track, uw=0.1, dw=0.05):
    """Pure-JAX reference mirroring the PyTorch forward (base_loss = MSE)."""
    M = track_preds.shape[0]
    tgt = target_track
    member = jnp.stack([jnp.mean((track_preds[i] - tgt) ** 2) for i in range(M)])
    mean = jnp.mean(track_preds, axis=0)
    var = jnp.var(track_preds, axis=0, ddof=1)
    mean_loss = jnp.mean((mean - tgt) ** 2)
    err = jnp.linalg.norm(mean - tgt, axis=-1)
    std = jnp.sqrt(var.sum(-1))
    nll = jnp.log(std + 1e-6) + err ** 2 / (2 * std ** 2 + 1e-6)
    if dw > 0:
        div = 0.0
        for i in range(M):
            for j in range(i + 1, M):
                div = div - jnp.mean(
                    jnp.linalg.norm(track_preds[i] - track_preds[j], axis=-1))
        div = div / (M * (M - 1) / 2)
    else:
        div = jnp.float32(0.0)
    total = mean_loss + uw * nll.mean() + dw * div
    return {"total": total, "mean_prediction": mean_loss,
            "uncertainty": nll.mean(), "diversity": div, "member_losses": member}


def _check(out, ref, rtol=1e-2, atol=1e-3):
    for k in ("total", "mean_prediction", "uncertainty", "diversity"):
        np.testing.assert_allclose(np.asarray(out[k]), np.asarray(ref[k]),
                                   rtol=rtol, atol=atol)
    np.testing.assert_allclose(np.asarray(out["member_losses"]),
                               np.asarray(ref["member_losses"]),
                               rtol=rtol, atol=atol)


if __name__ == "__main__":
    key = jax.random.PRNGKey(0)
    M, B, T, D = 4, 2, 1024, 4              # N = B*T = 2048 samples
    k1, k2, k3, k4 = jax.random.split(key, 4)
    track_preds = jax.random.normal(k1, (M, B, T, D), dtype=jnp.float32)
    target = jax.random.normal(k2, (B, T, D), dtype=jnp.float32)
    ref = _reference(track_preds, target)

    # 1) default: budget-derived tile (single grid step, 2 in-kernel chunks)
    out = ensemble_loss(track_preds, target)
    out = jax.tree_util.tree_map(jax.block_until_ready, out)
    _check(out, ref)

    # 2) small tile cap: exercises the multi-step streaming accumulation path
    out2 = ensemble_loss(track_preds, target, max_tile_lanes=512)
    out2 = jax.tree_util.tree_map(jax.block_until_ready, out2)
    _check(out2, ref)

    # 3) unaligned N: exercises zero-padding + in-kernel NLL validity mask
    preds_u = jax.random.normal(k3, (M, 1, 100, D), dtype=jnp.float32)
    target_u = jax.random.normal(k4, (1, 100, D), dtype=jnp.float32)
    out3 = ensemble_loss(preds_u, target_u)
    out3 = jax.tree_util.tree_map(jax.block_until_ready, out3)
    _check(out3, _reference(preds_u, target_u))

    print("KERNEL_OK")
</pallas_src>

<mosaic_0001>
module attributes {stable_mosaic.version = 11 : i64} {
  func.func @_ensemble_loss_kernel(%arg0: i32, %arg1: memref<4x8x1024xf32, #tpu.memory_space<vmem>>, %arg2: memref<8x1024xf32, #tpu.memory_space<vmem>>, %arg3: memref<4xf32, #tpu.memory_space<smem>>, %arg4: memref<4xf32, #tpu.memory_space<smem>>, %arg5: memref<4x8x512xf32, #tpu.memory_space<vmem>>, %arg6: memref<8x512xf32, #tpu.memory_space<vmem>>, %arg7: memref<8x512xf32, #tpu.memory_space<vmem>>, %arg8: memref<8x512xf32, #tpu.memory_space<vmem>>) attributes {dimension_semantics = [#tpu.dimension_semantics<arbitrary>], iteration_bounds = array<i64: 1>, scalar_prefetch = 0 : i64, scratch_operands = 4 : i64, tpu.core_type = #tpu.core_type<tc>, window_params = [{transform_indices = @transform_0, window_bounds = array<i64: 4, 8, 1024>}, {transform_indices = @transform_1, window_bounds = array<i64: 8, 1024>}, {transform_indices = @transform_2, window_bounds = array<i64: 4>}, {transform_indices = @transform_3, window_bounds = array<i64: 4>}]} {
    %c0_i32 = arith.constant 0 : i32
    %0 = arith.cmpi eq, %arg0, %c0_i32 : i32
    %1 = arith.extui %0 : i1 to i32
    %c0_i32_0 = arith.constant 0 : i32
    %2 = arith.cmpi ne, %1, %c0_i32_0 : i32
    scf.if %2 {
      %cst = arith.constant 0.000000e+00 : f32
      %34 = vector.broadcast %cst : f32 to vector<4x8x512xf32>
      %c0 = arith.constant 0 : index
      %c0_12 = arith.constant 0 : index
      %c0_13 = arith.constant 0 : index
      %35 = vector.load %arg5[%c0, %c0_12, %c0_13] : memref<4x8x512xf32, #tpu.memory_space<vmem>>, vector<4x8x512xf32>
      tpu.vector_store %arg5[%c0, %c0_12, %c0_13], %34 {strides = array<i32>} : memref<4x8x512xf32, #tpu.memory_space<vmem>>, vector<4x8x512xf32>,
      %cst_14 = arith.constant 0.000000e+00 : f32
      %36 = vector.broadcast %cst_14 : f32 to vector<8x512xf32>
      %c0_15 = arith.constant 0 : index
      %c0_16 = arith.constant 0 : index
      %37 = vector.load %arg6[%c0_15, %c0_16] : memref<8x512xf32, #tpu.memory_space<vmem>>, vector<8x512xf32>
      tpu.vector_store %arg6[%c0_15, %c0_16], %36 {strides = array<i32>} : memref<8x512xf32, #tpu.memory_space<vmem>>, vector<8x512xf32>,
      %cst_17 = arith.constant 0.000000e+00 : f32
      %38 = vector.broadcast %cst_17 : f32 to vector<8x512xf32>
      %c0_18 = arith.constant 0 : index
      %c0_19 = arith.constant 0 : index
      %39 = vector.load %arg7[%c0_18, %c0_19] : memref<8x512xf32, #tpu.memory_space<vmem>>, vector<8x512xf32>
      tpu.vector_store %arg7[%c0_18, %c0_19], %38 {strides = array<i32>} : memref<8x512xf32, #tpu.memory_space<vmem>>, vector<8x512xf32>,
      %cst_20 = arith.constant 0.000000e+00 : f32
      %40 = vector.broadcast %cst_20 : f32 to vector<8x512xf32>
      %c0_21 = arith.constant 0 : index
      %c0_22 = arith.constant 0 : index
      %41 = vector.load %arg8[%c0_21, %c0_22] : memref<8x512xf32, #tpu.memory_space<vmem>>, vector<8x512xf32>
      tpu.vector_store %arg8[%c0_21, %c0_22], %40 {strides = array<i32>} : memref<8x512xf32, #tpu.memory_space<vmem>>, vector<8x512xf32>,
    } else {
    }
    %3 = tpu.iota {dimensions = array<i32: 1>} : vector<8x512xi32>
    %4 = tpu.iota {dimensions = array<i32: 1>} : vector<8x128xi32>
    %c1_i32 = arith.constant 1 : i32
    %5 = tpu.dynamic_rotate %4 by %c1_i32 dim 1 : vector<8x128xi32>, i32 -> vector<8x128xi32>
    %6 = vector.extract_strided_slice %5 {offsets = [0, 0], sizes = [1, 1], strides = [1, 1]} : vector<8x128xi32> to vector<1x1xi32>
    %c127_i32 = arith.constant 127 : i32
    %7 = vector.broadcast %c127_i32 : i32 to vector<1x1xi32>
    %8 = arith.cmpi eq, %6, %7 : vector<1x1xi32>
    %c3_i32 = arith.constant 3 : i32
    %c0_i32_1 = arith.constant 0 : i32
    %9 = vector.broadcast %c3_i32 : i32 to vector<1x1xi32>
    %10 = vector.broadcast %c0_i32_1 : i32 to vector<1x1xi32>
    %11 = arith.select %8, %9, %10 : vector<1x1xi1>, vector<1x1xi32>
    %c4_i32 = arith.constant 4 : i32
    %c0_i32_2 = arith.constant 0 : i32
    %12 = arith.cmpi eq, %c4_i32, %c0_i32_2 : i32
    %c1_i32_3 = arith.constant 1 : i32
    %13 = arith.select %12, %c1_i32_3, %c4_i32 : i32
    %14 = vector.broadcast %13 : i32 to vector<8x512xi32>
    %15 = arith.remsi %3, %14 : vector<8x512xi32>
    %c0_i32_4 = arith.constant 0 : i32
    %16 = vector.broadcast %c0_i32_4 : i32 to vector<8x512xi32>
    %17 = arith.cmpi ne, %15, %16 : vector<8x512xi32>
    %c0_i32_5 = arith.constant 0 : i32
    %18 = vector.broadcast %c0_i32_5 : i32 to vector<8x512xi32>
    %19 = arith.cmpi slt, %15, %18 : vector<8x512xi32>
    %c0_i32_6 = arith.constant 0 : i32
    %20 = arith.cmpi slt, %13, %c0_i32_6 : i32
    %21 = vector.broadcast %20 : i1 to vector<8x512xi1>
    %22 = vector.broadcast %21 : vector<8x512xi1> to vector<8x512xi1>
    %23 = arith.xori %19, %22 : vector<8x512xi1>
    %24 = arith.andi %23, %17 : vector<8x512xi1>
    %25 = vector.broadcast %13 : i32 to vector<8x512xi32>
    %26 = arith.addi %15, %25 : vector<8x512xi32>
    %27 = arith.select %24, %26, %15 : vector<8x512xi1>, vector<8x512xi32>
    %28 = vector.broadcast %11 : vector<1x1xi32> to vector<8x512xi32>
    %29 = arith.cmpi eq, %27, %28 : vector<8x512xi32>
    %c0_i32_7 = arith.constant 0 : i32
    %c2_i32 = arith.constant 2 : i32
    %30 = arith.addi %c0_i32_7, %c2_i32 : i32
    %c1_i32_8 = arith.constant 1 : i32
    scf.for %arg9 = %c0_i32_7 to %30 step %c1_i32_8  : i32 {
      %c1_i32_12 = arith.constant 1 : i32
      %34 = arith.muli %arg9, %c1_i32_12 : i32
      %c0_i32_13 = arith.constant 0 : i32
      %35 = arith.addi %c0_i32_13, %34 : i32
      %c512_i32 = arith.constant 512 : i32
      %36 = arith.muli %35, %c512_i32 : i32
      %37 = tpu.assume_multiple %36, 512 : i32
      %c0 = arith.constant 0 : index
      %38 = arith.index_cast %37 : i32 to index
      %39 = vector.load %arg2[%c0, %38] : memref<8x1024xf32, #tpu.memory_space<vmem>>, vector<8x512xf32>
      %cst = arith.constant 0.000000e+00 : f32
      %40 = vector.broadcast %cst : f32 to vector<8x512xf32>
      %cst_14 = arith.constant 0.000000e+00 : f32
      %41 = vector.broadcast %cst_14 : f32 to vector<8x512xf32>
      %c0_15 = arith.constant 0 : index
      %c0_16 = arith.constant 0 : index
      %42 = arith.index_cast %37 : i32 to index
      %43 = vector.load %arg1[%c0_15, %c0_16, %42] : memref<4x8x1024xf32, #tpu.memory_space<vmem>>, vector<1x8x512xf32>
      %44 = vector.shape_cast %43 : vector<1x8x512xf32> to vector<8x512xf32>
      %45 = arith.subf %44, %39 : vector<8x512xf32>
      %c0_17 = arith.constant 0 : index
      %c0_18 = arith.constant 0 : index
      %c0_19 = arith.constant 0 : index
      %46 = vector.load %arg5[%c0_17, %c0_18, %c0_19] : memref<4x8x512xf32, #tpu.memory_space<vmem>>, vector<1x8x512xf32>
      %47 = vector.shape_cast %46 : vector<1x8x512xf32> to vector<8x512xf32>
      %48 = arith.mulf %45, %45 : vector<8x512xf32>
      %49 = arith.addf %47, %48 : vector<8x512xf32>
      %c0_20 = arith.constant 0 : index
      %c0_21 = arith.constant 0 : index
      %c0_22 = arith.constant 0 : index
      %50 = vector.load %arg5[%c0_20, %c0_21, %c0_22] : memref<4x8x512xf32, #tpu.memory_space<vmem>>, vector<1x8x512xf32>
      %51 = vector.shape_cast %50 : vector<1x8x512xf32> to vector<8x512xf32>
      %52 = vector.shape_cast %49 : vector<8x512xf32> to vector<1x8x512xf32>
      tpu.vector_store %arg5[%c0_20, %c0_21, %c0_22], %52 {strides = array<i32>} : memref<4x8x512xf32, #tpu.memory_space<vmem>>, vector<1x8x512xf32>,
      %53 = arith.addf %40, %44 : vector<8x512xf32>
      %54 = arith.mulf %44, %44 : vector<8x512xf32>
      %55 = arith.addf %41, %54 : vector<8x512xf32>
      %c1 = arith.constant 1 : index
      %c0_23 = arith.constant 0 : index
      %56 = arith.index_cast %37 : i32 to index
      %57 = vector.load %arg1[%c1, %c0_23, %56] : memref<4x8x1024xf32, #tpu.memory_space<vmem>>, vector<1x8x512xf32>
      %58 = vector.shape_cast %57 : vector<1x8x512xf32> to vector<8x512xf32>
      %59 = arith.subf %58, %39 : vector<8x512xf32>
      %c1_24 = arith.constant 1 : index
      %c0_25 = arith.constant 0 : index
      %c0_26 = arith.constant 0 : index
      %60 = vector.load %arg5[%c1_24, %c0_25, %c0_26] : memref<4x8x512xf32, #tpu.memory_space<vmem>>, vector<1x8x512xf32>
      %61 = vector.shape_cast %60 : vector<1x8x512xf32> to vector<8x512xf32>
      %62 = arith.mulf %59, %59 : vector<8x512xf32>
      %63 = arith.addf %61, %62 : vector<8x512xf32>
      %c1_27 = arith.constant 1 : index
      %c0_28 = arith.constant 0 : index
      %c0_29 = arith.constant 0 : index
      %64 = vector.load %arg5[%c1_27, %c0_28, %c0_29] : memref<4x8x512xf32, #tpu.memory_space<vmem>>, vector<1x8x512xf32>
      %65 = vector.shape_cast %64 : vector<1x8x512xf32> to vector<8x512xf32>
      %66 = vector.shape_cast %63 : vector<8x512xf32> to vector<1x8x512xf32>
      tpu.vector_store %arg5[%c1_27, %c0_28, %c0_29], %66 {strides = array<i32>} : memref<4x8x512xf32, #tpu.memory_space<vmem>>, vector<1x8x512xf32>,
      %67 = arith.addf %53, %58 : vector<8x512xf32>
      %68 = arith.mulf %58, %58 : vector<8x512xf32>
      %69 = arith.addf %55, %68 : vector<8x512xf32>
      %c2 = arith.constant 2 : index
      %c0_30 = arith.constant 0 : index
      %70 = arith.index_cast %37 : i32 to index
      %71 = vector.load %arg1[%c2, %c0_30, %70] : memref<4x8x1024xf32, #tpu.memory_space<vmem>>, vector<1x8x512xf32>
      %72 = vector.shape_cast %71 : vector<1x8x512xf32> to vector<8x512xf32>
      %73 = arith.subf %72, %39 : vector<8x512xf32>
      %c2_31 = arith.constant 2 : index
      %c0_32 = arith.constant 0 : index
      %c0_33 = arith.constant 0 : index
      %74 = vector.load %arg5[%c2_31, %c0_32, %c0_33] : memref<4x8x512xf32, #tpu.memory_space<vmem>>, vector<1x8x512xf32>
      %75 = vector.shape_cast %74 : vector<1x8x512xf32> to vector<8x512xf32>
      %76 = arith.mulf %73, %73 : vector<8x512xf32>
      %77 = arith.addf %75, %76 : vector<8x512xf32>
      %c2_34 = arith.constant 2 : index
      %c0_35 = arith.constant 0 : index
      %c0_36 = arith.constant 0 : index
      %78 = vector.load %arg5[%c2_34, %c0_35, %c0_36] : memref<4x8x512xf32, #tpu.memory_space<vmem>>, vector<1x8x512xf32>
      %79 = vector.shape_cast %78 : vector<1x8x512xf32> to vector<8x512xf32>
      %80 = vector.shape_cast %77 : vector<8x512xf32> to vector<1x8x512xf32>
      tpu.vector_store %arg5[%c2_34, %c0_35, %c0_36], %80 {strides = array<i32>} : memref<4x8x512xf32, #tpu.memory_space<vmem>>, vector<1x8x512xf32>,
      %81 = arith.addf %67, %72 : vector<8x512xf32>
      %82 = arith.mulf %72, %72 : vector<8x512xf32>
      %83 = arith.addf %69, %82 : vector<8x512xf32>
      %c3 = arith.constant 3 : index
      %c0_37 = arith.constant 0 : index
      %84 = arith.index_cast %37 : i32 to index
      %85 = vector.load %arg1[%c3, %c0_37, %84] : memref<4x8x1024xf32, #tpu.memory_space<vmem>>, vector<1x8x512xf32>
      %86 = vector.shape_cast %85 : vector<1x8x512xf32> to vector<8x512xf32>
      %87 = arith.subf %86, %39 : vector<8x512xf32>
      %c3_38 = arith.constant 3 : index
      %c0_39 = arith.constant 0 : index
      %c0_40 = arith.constant 0 : index
      %88 = vector.load %arg5[%c3_38, %c0_39, %c0_40] : memref<4x8x512xf32, #tpu.memory_space<vmem>>, vector<1x8x512xf32>
      %89 = vector.shape_cast %88 : vector<1x8x512xf32> to vector<8x512xf32>
      %90 = arith.mulf %87, %87 : vector<8x512xf32>
      %91 = arith.addf %89, %90 : vector<8x512xf32>
      %c3_41 = arith.constant 3 : index
      %c0_42 = arith.constant 0 : index
      %c0_43 = arith.constant 0 : index
      %92 = vector.load %arg5[%c3_41, %c0_42, %c0_43] : memref<4x8x512xf32, #tpu.memory_space<vmem>>, vector<1x8x512xf32>
      %93 = vector.shape_cast %92 : vector<1x8x512xf32> to vector<8x512xf32>
      %94 = vector.shape_cast %91 : vector<8x512xf32> to vector<1x8x512xf32>
      tpu.vector_store %arg5[%c3_41, %c0_42, %c0_43], %94 {strides = array<i32>} : memref<4x8x512xf32, #tpu.memory_space<vmem>>, vector<1x8x512xf32>,
      %95 = arith.addf %81, %86 : vector<8x512xf32>
      %96 = arith.mulf %86, %86 : vector<8x512xf32>
      %97 = arith.addf %83, %96 : vector<8x512xf32>
      %cst_44 = arith.constant 0.000000e+00 : f32
      %98 = vector.broadcast %cst_44 : f32 to vector<8x512xf32>
      %99 = arith.subf %44, %58 : vector<8x512xf32>
      %100 = arith.mulf %99, %99 : vector<8x512xf32>
      %c1_i32_45 = arith.constant 1 : i32
      %101 = tpu.dynamic_rotate %100 by %c1_i32_45 dim 1 : vector<8x512xf32>, i32 -> vector<8x512xf32>
      %102 = arith.addf %100, %101 : vector<8x512xf32>
      %c2_i32_46 = arith.constant 2 : i32
      %103 = tpu.dynamic_rotate %102 by %c2_i32_46 dim 1 : vector<8x512xf32>, i32 -> vector<8x512xf32>
      %104 = arith.addf %102, %103 : vector<8x512xf32>
      %cst_47 = arith.constant 0.000000e+00 : f32
      %105 = vector.broadcast %cst_47 : f32 to vector<8x512xf32>
      %106 = arith.maximumf %104, %105 : vector<8x512xf32>
      %107 = math.sqrt %106 : vector<8x512xf32>
      %108 = arith.addf %98, %107 : vector<8x512xf32>
      %109 = arith.subf %44, %72 : vector<8x512xf32>
      %110 = arith.mulf %109, %109 : vector<8x512xf32>
      %c1_i32_48 = arith.constant 1 : i32
      %111 = tpu.dynamic_rotate %110 by %c1_i32_48 dim 1 : vector<8x512xf32>, i32 -> vector<8x512xf32>
      %112 = arith.addf %110, %111 : vector<8x512xf32>
      %c2_i32_49 = arith.constant 2 : i32
      %113 = tpu.dynamic_rotate %112 by %c2_i32_49 dim 1 : vector<8x512xf32>, i32 -> vector<8x512xf32>
      %114 = arith.addf %112, %113 : vector<8x512xf32>
      %cst_50 = arith.constant 0.000000e+00 : f32
      %115 = vector.broadcast %cst_50 : f32 to vector<8x512xf32>
      %116 = arith.maximumf %114, %115 : vector<8x512xf32>
      %117 = math.sqrt %116 : vector<8x512xf32>
      %118 = arith.addf %108, %117 : vector<8x512xf32>
      %119 = arith.subf %44, %86 : vector<8x512xf32>
      %120 = arith.mulf %119, %119 : vector<8x512xf32>
      %c1_i32_51 = arith.constant 1 : i32
      %121 = tpu.dynamic_rotate %120 by %c1_i32_51 dim 1 : vector<8x512xf32>, i32 -> vector<8x512xf32>
      %122 = arith.addf %120, %121 : vector<8x512xf32>
      %c2_i32_52 = arith.constant 2 : i32
      %123 = tpu.dynamic_rotate %122 by %c2_i32_52 dim 1 : vector<8x512xf32>, i32 -> vector<8x512xf32>
      %124 = arith.addf %122, %123 : vector<8x512xf32>
      %cst_53 = arith.constant 0.000000e+00 : f32
      %125 = vector.broadcast %cst_53 : f32 to vector<8x512xf32>
      %126 = arith.maximumf %124, %125 : vector<8x512xf32>
      %127 = math.sqrt %126 : vector<8x512xf32>
      %128 = arith.addf %118, %127 : vector<8x512xf32>
      %129 = arith.subf %58, %72 : vector<8x512xf32>
      %130 = arith.mulf %129, %129 : vector<8x512xf32>
      %c1_i32_54 = arith.constant 1 : i32
      %131 = tpu.dynamic_rotate %130 by %c1_i32_54 dim 1 : vector<8x512xf32>, i32 -> vector<8x512xf32>
      %132 = arith.addf %130, %131 : vector<8x512xf32>
      %c2_i32_55 = arith.constant 2 : i32
      %133 = tpu.dynamic_rotate %132 by %c2_i32_55 dim 1 : vector<8x512xf32>, i32 -> vector<8x512xf32>
      %134 = arith.addf %132, %133 : vector<8x512xf32>
      %cst_56 = arith.constant 0.000000e+00 : f32
      %135 = vector.broadcast %cst_56 : f32 to vector<8x512xf32>
      %136 = arith.maximumf %134, %135 : vector<8x512xf32>
      %137 = math.sqrt %136 : vector<8x512xf32>
      %138 = arith.addf %128, %137 : vector<8x512xf32>
      %139 = arith.subf %58, %86 : vector<8x512xf32>
      %140 = arith.mulf %139, %139 : vector<8x512xf32>
      %c1_i32_57 = arith.constant 1 : i32
      %141 = tpu.dynamic_rotate %140 by %c1_i32_57 dim 1 : vector<8x512xf32>, i32 -> vector<8x512xf32>
      %142 = arith.addf %140, %141 : vector<8x512xf32>
      %c2_i32_58 = arith.constant 2 : i32
      %143 = tpu.dynamic_rotate %142 by %c2_i32_58 dim 1 : vector<8x512xf32>, i32 -> vector<8x512xf32>
      %144 = arith.addf %142, %143 : vector<8x512xf32>
      %cst_59 = arith.constant 0.000000e+00 : f32
      %145 = vector.broadcast %cst_59 : f32 to vector<8x512xf32>
      %146 = arith.maximumf %144, %145 : vector<8x512xf32>
      %147 = math.sqrt %146 : vector<8x512xf32>
      %148 = arith.addf %138, %147 : vector<8x512xf32>
      %149 = arith.subf %72, %86 : vector<8x512xf32>
      %150 = arith.mulf %149, %149 : vector<8x512xf32>
      %c1_i32_60 = arith.constant 1 : i32
      %151 = tpu.dynamic_rotate %150 by %c1_i32_60 dim 1 : vector<8x512xf32>, i32 -> vector<8x512xf32>
      %152 = arith.addf %150, %151 : vector<8x512xf32>
      %c2_i32_61 = arith.constant 2 : i32
      %153 = tpu.dynamic_rotate %152 by %c2_i32_61 dim 1 : vector<8x512xf32>, i32 -> vector<8x512xf32>
      %154 = arith.addf %152, %153 : vector<8x512xf32>
      %cst_62 = arith.constant 0.000000e+00 : f32
      %155 = vector.broadcast %cst_62 : f32 to vector<8x512xf32>
      %156 = arith.maximumf %154, %155 : vector<8x512xf32>
      %157 = math.sqrt %156 : vector<8x512xf32>
      %158 = arith.addf %148, %157 : vector<8x512xf32>
      %c0_63 = arith.constant 0 : index
      %c0_64 = arith.constant 0 : index
      %159 = vector.load %arg8[%c0_63, %c0_64] : memref<8x512xf32, #tpu.memory_space<vmem>>, vector<8x512xf32>
      %cst_65 = arith.constant 0.000000e+00 : f32
      %160 = vector.broadcast %cst_65 : f32 to vector<8x512xf32>
      %161 = arith.select %29, %158, %160 : vector<8x512xi1>, vector<8x512xf32>
      %162 = arith.addf %159, %161 : vector<8x512xf32>
      %c0_66 = arith.constant 0 : index
      %c0_67 = arith.constant 0 : index
      %163 = vector.load %arg8[%c0_66, %c0_67] : memref<8x512xf32, #tpu.memory_space<vmem>>, vector<8x512xf32>
      tpu.vector_store %arg8[%c0_66, %c0_67], %162 {strides = array<i32>} : memref<8x512xf32, #tpu.memory_space<vmem>>, vector<8x512xf32>,
      %cst_68 = arith.constant 2.500000e-01 : f32
      %164 = vector.broadcast %cst_68 : f32 to vector<8x512xf32>
      %165 = arith.mulf %95, %164 : vector<8x512xf32>
      %166 = arith.subf %165, %39 : vector<8x512xf32>
      %167 = arith.mulf %166, %166 : vector<8x512xf32>
      %c0_69 = arith.constant 0 : index
      %c0_70 = arith.constant 0 : index
      %168 = vector.load %arg6[%c0_69, %c0_70] : memref<8x512xf32, #tpu.memory_space<vmem>>, vector<8x512xf32>
      %169 = arith.addf %168, %167 : vector<8x512xf32>
      %c0_71 = arith.constant 0 : index
      %c0_72 = arith.constant 0 : index
      %170 = vector.load %arg6[%c0_71, %c0_72] : memref<8x512xf32, #tpu.memory_space<vmem>>, vector<8x512xf32>
      tpu.vector_store %arg6[%c0_71, %c0_72], %169 {strides = array<i32>} : memref<8x512xf32, #tpu.memory_space<vmem>>, vector<8x512xf32>,
      %171 = arith.mulf %95, %165 : vector<8x512xf32>
      %172 = arith.subf %97, %171 : vector<8x512xf32>
      %cst_73 = arith.constant 0.333333343 : f32
      %173 = vector.broadcast %cst_73 : f32 to vector<8x512xf32>
      %174 = arith.mulf %172, %173 : vector<8x512xf32>
      %c1_i32_74 = arith.constant 1 : i32
      %175 = tpu.dynamic_rotate %174 by %c1_i32_74 dim 1 : vector<8x512xf32>, i32 -> vector<8x512xf32>
      %176 = arith.addf %174, %175 : vector<8x512xf32>
      %c2_i32_75 = arith.constant 2 : i32
      %177 = tpu.dynamic_rotate %176 by %c2_i32_75 dim 1 : vector<8x512xf32>, i32 -> vector<8x512xf32>
      %178 = arith.addf %176, %177 : vector<8x512xf32>
      %cst_76 = arith.constant 0.000000e+00 : f32
      %179 = vector.broadcast %cst_76 : f32 to vector<8x512xf32>
      %180 = arith.maximumf %178, %179 : vector<8x512xf32>
      %c1_i32_77 = arith.constant 1 : i32
      %181 = tpu.dynamic_rotate %167 by %c1_i32_77 dim 1 : vector<8x512xf32>, i32 -> vector<8x512xf32>
      %182 = arith.addf %167, %181 : vector<8x512xf32>
      %c2_i32_78 = arith.constant 2 : i32
      %183 = tpu.dynamic_rotate %182 by %c2_i32_78 dim 1 : vector<8x512xf32>, i32 -> vector<8x512xf32>
      %184 = arith.addf %182, %183 : vector<8x512xf32>
      %185 = math.sqrt %180 : vector<8x512xf32>
      %cst_79 = arith.constant 9.99999997E-7 : f32
      %186 = vector.broadcast %cst_79 : f32 to vector<8x512xf32>
      %187 = arith.addf %185, %186 : vector<8x512xf32>
      %188 = math.log %187 : vector<8x512xf32>
      %cst_80 = arith.constant 2.000000e+00 : f32
      %189 = vector.broadcast %cst_80 : f32 to vector<8x512xf32>
      %190 = arith.mulf %189, %180 : vector<8x512xf32>
      %cst_81 = arith.constant 9.99999997E-7 : f32
      %191 = vector.broadcast %cst_81 : f32 to vector<8x512xf32>
      %192 = arith.addf %190, %191 : vector<8x512xf32>
      %193 = tpu.reciprocal %192 {approx = true} : vector<8x512xf32> -> vector<8x512xf32>
      %194 = arith.mulf %184, %193 : vector<8x512xf32>
      %195 = arith.addf %188, %194 : vector<8x512xf32>
      %c0_82 = arith.constant 0 : index
      %c0_83 = arith.constant 0 : index
      %196 = vector.load %arg7[%c0_82, %c0_83] : memref<8x512xf32, #tpu.memory_space<vmem>>, vector<8x512xf32>
      %cst_84 = arith.constant 0.000000e+00 : f32
      %197 = vector.broadcast %cst_84 : f32 to vector<8x512xf32>
      %198 = arith.select %29, %195, %197 : vector<8x512xi1>, vector<8x512xf32>
      %199 = arith.addf %196, %198 : vector<8x512xf32>
      %c0_85 = arith.constant 0 : index
      %c0_86 = arith.constant 0 : index
      %200 = vector.load %arg7[%c0_85, %c0_86] : memref<8x512xf32, #tpu.memory_space<vmem>>, vector<8x512xf32>
      tpu.vector_store %arg7[%c0_85, %c0_86], %199 {strides = array<i32>} : memref<8x512xf32, #tpu.memory_space<vmem>>, vector<8x512xf32>,
    }
    %c2_i32_9 = arith.constant 2 : i32
    %c0_i32_10 = arith.constant 0 : i32
    %31 = arith.cmpi eq, %arg0, %c0_i32_10 : i32
    %32 = arith.extui %31 : i1 to i32
    %c0_i32_11 = arith.constant 0 : i32
    %33 = arith.cmpi ne, %32, %c0_i32_11 : i32
    scf.if %33 {
      %c0 = arith.constant 0 : index
      %c0_12 = arith.constant 0 : index
      %c0_13 = arith.constant 0 : index
      %34 = vector.load %arg5[%c0, %c0_12, %c0_13] : memref<4x8x512xf32, #tpu.memory_space<vmem>>, vector<1x8x512xf32>
      %35 = vector.shape_cast %34 : vector<1x8x512xf32> to vector<8x512xf32>
      %36 = vector.shape_cast %35 : vector<8x512xf32> to vector<1x8x512xf32>
      %cst = arith.constant dense<0.000000e+00> : vector<1xf32>
      %37 = vector.multi_reduction <add>, %36, %cst [1, 2] : vector<1x8x512xf32> to vector<1xf32>
      %38 = vector.shape_cast %37 : vector<1xf32> to vector<1x1x1xf32>
      %39 = vector.extract %38[0, 0, 0] : f32 from vector<1x1x1xf32>
      %cst_14 = arith.constant 1.22070313E-4 : f32
      %40 = arith.mulf %39, %cst_14 : f32
      %c0_15 = arith.constant 0 : index
      %41 = memref.load %arg4[%c0_15] : memref<4xf32, #tpu.memory_space<smem>>
      memref.store %40, %arg4[%c0_15] : memref<4xf32, #tpu.memory_space<smem>>
      %c1 = arith.constant 1 : index
      %c0_16 = arith.constant 0 : index
      %c0_17 = arith.constant 0 : index
      %42 = vector.load %arg5[%c1, %c0_16, %c0_17] : memref<4x8x512xf32, #tpu.memory_space<vmem>>, vector<1x8x512xf32>
      %43 = vector.shape_cast %42 : vector<1x8x512xf32> to vector<8x512xf32>
      %44 = vector.shape_cast %43 : vector<8x512xf32> to vector<1x8x512xf32>
      %cst_18 = arith.constant dense<0.000000e+00> : vector<1xf32>
      %45 = vector.multi_reduction <add>, %44, %cst_18 [1, 2] : vector<1x8x512xf32> to vector<1xf32>
      %46 = vector.shape_cast %45 : vector<1xf32> to vector<1x1x1xf32>
      %47 = vector.extract %46[0, 0, 0] : f32 from vector<1x1x1xf32>
      %cst_19 = arith.constant 1.22070313E-4 : f32
      %48 = arith.mulf %47, %cst_19 : f32
      %c1_20 = arith.constant 1 : index
      %49 = memref.load %arg4[%c1_20] : memref<4xf32, #tpu.memory_space<smem>>
      memref.store %48, %arg4[%c1_20] : memref<4xf32, #tpu.memory_space<smem>>
      %c2 = arith.constant 2 : index
      %c0_21 = arith.constant 0 : index
      %c0_22 = arith.constant 0 : index
      %50 = vector.load %arg5[%c2, %c0_21, %c0_22] : memref<4x8x512xf32, #tpu.memory_space<vmem>>, vector<1x8x512xf32>
      %51 = vector.shape_cast %50 : vector<1x8x512xf32> to vector<8x512xf32>
      %52 = vector.shape_cast %51 : vector<8x512xf32> to vector<1x8x512xf32>
      %cst_23 = arith.constant dense<0.000000e+00> : vector<1xf32>
      %53 = vector.multi_reduction <add>, %52, %cst_23 [1, 2] : vector<1x8x512xf32> to vector<1xf32>
      %54 = vector.shape_cast %53 : vector<1xf32> to vector<1x1x1xf32>
      %55 = vector.extract %54[0, 0, 0] : f32 from vector<1x1x1xf32>
      %cst_24 = arith.constant 1.22070313E-4 : f32
      %56 = arith.mulf %55, %cst_24 : f32
      %c2_25 = arith.constant 2 : index
      %57 = memref.load %arg4[%c2_25] : memref<4xf32, #tpu.memory_space<smem>>
      memref.store %56, %arg4[%c2_25] : memref<4xf32, #tpu.memory_space<smem>>
      %c3 = arith.constant 3 : index
      %c0_26 = arith.constant 0 : index
      %c0_27 = arith.constant 0 : index
      %58 = vector.load %arg5[%c3, %c0_26, %c0_27] : memref<4x8x512xf32, #tpu.memory_space<vmem>>, vector<1x8x512xf32>
      %59 = vector.shape_cast %58 : vector<1x8x512xf32> to vector<8x512xf32>
      %60 = vector.shape_cast %59 : vector<8x512xf32> to vector<1x8x512xf32>
      %cst_28 = arith.constant dense<0.000000e+00> : vector<1xf32>
      %61 = vector.multi_reduction <add>, %60, %cst_28 [1, 2] : vector<1x8x512xf32> to vector<1xf32>
      %62 = vector.shape_cast %61 : vector<1xf32> to vector<1x1x1xf32>
      %63 = vector.extract %62[0, 0, 0] : f32 from vector<1x1x1xf32>
      %cst_29 = arith.constant 1.22070313E-4 : f32
      %64 = arith.mulf %63, %cst_29 : f32
      %c3_30 = arith.constant 3 : index
      %65 = memref.load %arg4[%c3_30] : memref<4xf32, #tpu.memory_space<smem>>
      memref.store %64, %arg4[%c3_30] : memref<4xf32, #tpu.memory_space<smem>>
      %c0_31 = arith.constant 0 : index
      %c0_32 = arith.constant 0 : index
      %66 = vector.load %arg6[%c0_31, %c0_32] : memref<8x512xf32, #tpu.memory_space<vmem>>, vector<8x512xf32>
      %67 = vector.shape_cast %66 : vector<8x512xf32> to vector<1x8x512xf32>
      %cst_33 = arith.constant dense<0.000000e+00> : vector<1xf32>
      %68 = vector.multi_reduction <add>, %67, %cst_33 [1, 2] : vector<1x8x512xf32> to vector<1xf32>
      %69 = vector.shape_cast %68 : vector<1xf32> to vector<1x1x1xf32>
      %70 = vector.extract %69[0, 0, 0] : f32 from vector<1x1x1xf32>
      %cst_34 = arith.constant 1.22070313E-4 : f32
      %71 = arith.mulf %70, %cst_34 : f32
      %c0_35 = arith.constant 0 : index
      %c0_36 = arith.constant 0 : index
      %72 = vector.load %arg7[%c0_35, %c0_36] : memref<8x512xf32, #tpu.memory_space<vmem>>, vector<8x512xf32>
      %73 = vector.shape_cast %72 : vector<8x512xf32> to vector<1x8x512xf32>
      %cst_37 = arith.constant dense<0.000000e+00> : vector<1xf32>
      %74 = vector.multi_reduction <add>, %73, %cst_37 [1, 2] : vector<1x8x512xf32> to vector<1xf32>
      %75 = vector.shape_cast %74 : vector<1xf32> to vector<1x1x1xf32>
      %76 = vector.extract %75[0, 0, 0] : f32 from vector<1x1x1xf32>
      %cst_38 = arith.constant 4.8828125E-4 : f32
      %77 = arith.mulf %76, %cst_38 : f32
      %c0_39 = arith.constant 0 : index
      %c0_40 = arith.constant 0 : index
      %78 = vector.load %arg8[%c0_39, %c0_40] : memref<8x512xf32, #tpu.memory_space<vmem>>, vector<8x512xf32>
      %79 = vector.shape_cast %78 : vector<8x512xf32> to vector<1x8x512xf32>
      %cst_41 = arith.constant dense<0.000000e+00> : vector<1xf32>
      %80 = vector.multi_reduction <add>, %79, %cst_41 [1, 2] : vector<1x8x512xf32> to vector<1xf32>
      %81 = vector.shape_cast %80 : vector<1xf32> to vector<1x1x1xf32>
      %82 = vector.extract %81[0, 0, 0] : f32 from vector<1x1x1xf32>
      %cst_42 = arith.constant 8.13802107E-5 : f32
      %83 = arith.mulf %82, %cst_42 : f32
      %cst_43 = arith.constant 0.000000e+00 : f32
      %84 = arith.subf %cst_43, %83 : f32
      %c1_44 = arith.constant 1 : index
      %85 = memref.load %arg3[%c1_44] : memref<4xf32, #tpu.memory_space<smem>>
      memref.store %71, %arg3[%c1_44] : memref<4xf32, #tpu.memory_space<smem>>
      %c2_45 = arith.constant 2 : index
      %86 = memref.load %arg3[%c2_45] : memref<4xf32, #tpu.memory_space<smem>>
      memref.store %77, %arg3[%c2_45] : memref<4xf32, #tpu.memory_space<smem>>
      %c3_46 = arith.constant 3 : index
      %87 = memref.load %arg3[%c3_46] : memref<4xf32, #tpu.memory_space<smem>>
      memref.store %84, %arg3[%c3_46] : memref<4xf32, #tpu.memory_space<smem>>
      %cst_47 = arith.constant 1.000000e-01 : f32
      %88 = arith.mulf %cst_47, %77 : f32
      %89 = arith.addf %71, %88 : f32
      %cst_48 = arith.constant 5.000000e-02 : f32
      %90 = arith.mulf %cst_48, %84 : f32
      %91 = arith.addf %89, %90 : f32
      %c0_49 = arith.constant 0 : index
      %92 = memref.load %arg3[%c0_49] : memref<4xf32, #tpu.memory_space<smem>>
      memref.store %91, %arg3[%c0_49] : memref<4xf32, #tpu.memory_space<smem>>
    } else {
    }
    return
  }
  func.func @transform_0(%arg0: i32) -> (i32, i32, i32) {
    %c0_i32 = arith.constant 0 : i32
    %c0_i32_0 = arith.constant 0 : i32
    %c0_i32_1 = arith.constant 0 : i32
    return %c0_i32, %c0_i32_0, %arg0 : i32, i32, i32
  }
  func.func @transform_1(%arg0: i32) -> (i32, i32) {
    %c0_i32 = arith.constant 0 : i32
    %c0_i32_0 = arith.constant 0 : i32
    return %c0_i32, %arg0 : i32, i32
  }
  func.func @transform_2(%arg0: i32) -> i32 {
    %c0_i32 = arith.constant 0 : i32
    %c0_i32_0 = arith.constant 0 : i32
    return %c0_i32 : i32
  }
  func.func @transform_3(%arg0: i32) -> i32 {
    %c0_i32 = arith.constant 0 : i32
    %c0_i32_0 = arith.constant 0 : i32
    return %c0_i32 : i32
  }
}

</mosaic_0001>

<llo_original>
// kernel: tpu_custom_call.1
$region0: #{tpu_custom_call.1}
  #allocation0 [shape = 'u32[]', space=smem, size = 0x4, offset = 0x4, fixed_abs, tag = 'smem constant byte address 0x4 - core index']
  #allocation1 [shape = 'u32[144,128]{1,0:T(1,128)}', space=vmem, size = 0x12000, scoped, tag = 'internal scratch']
  #allocation2 [shape = 'f32[4,8,512]{2,1,0:T(8,128)}', space=vmem, size = 0x10000, scoped, tag = 'scratch operand']
  #allocation3 [shape = 'f32[8,512]{1,0:T(8,128)}', space=vmem, size = 0x4000, scoped, tag = 'scratch operand']
  #allocation4 [shape = 'f32[8,512]{1,0:T(8,128)}', space=vmem, size = 0x4000, scoped, tag = 'scratch operand']
  #allocation5 [shape = 'f32[8,512]{1,0:T(8,128)}', space=vmem, size = 0x4000, scoped, tag = 'scratch operand']
  %s0 = inlined_call_operand.hbm [shape: f32[4,8,1024], index: 0, kind: input, shape index: {}]
  %s1 = inlined_call_operand.hbm [shape: f32[8,1024], index: 1, kind: input, shape index: {}]
  %s2 = inlined_call_operand.hbm [shape: f32[4], index: 2, kind: output, shape index: {0}]
  %s3 = inlined_call_operand.hbm [shape: f32[4], index: 3, kind: output, shape index: {1}]
  %4 = xla_tuple %s2, %s3
  %s5 = sld [smem:[#allocation0]]
  $region49: #{tpu_custom_call.1} parent=0
    _
  %s7 = ssub.s32 1, %s5
  %s8 = scalar_select 0, %s7, %s5
  $region1: #{tpu_custom_call.1} parent=0
    #allocation6 [shape = 'u8[131072]{0}', space=vmem, size = 0x20000, scoped, tag = 'input window, operand 0, single buffered']
    #allocation7 [shape = 's32[1]{0}', space=sflag, size = 0x4, scoped, tag = 'scoped memory for tpu_custom_call.1']
    #allocation8 [shape = 's32[1]{0}', space=sflag, size = 0x4, scoped, tag = 'scoped memory for tpu_custom_call.1']
    #allocation9 [shape = 'u8[32768]{0}', space=vmem, size = 0x8000, scoped, tag = 'input window, operand 1, single buffered']
    #allocation10 [shape = 's32[1]{0}', space=sflag, size = 0x4, scoped, tag = 'scoped memory for tpu_custom_call.1']
    #allocation11 [shape = 'u8[512]{0}', space=smem, size = 0x200, scoped, tag = 'output window, operand 0, single buffered']
    #allocation12 [shape = 'u8[512]{0}', space=smem, size = 0x200, scoped, tag = 'output window, operand 1, single buffered']
    #allocation13 [shape = 's32[1]{0}', space=sflag, size = 0x4, scoped, tag = 'scoped memory for tpu_custom_call.1']
    %9 = vsyncpa [#allocation7], 0
    %10 = vsyncpa [#allocation10], 0
    %11 = vsyncpa [#allocation8], 0
    %12 = vsyncpa [#allocation13], 0
    // Predicated region
    $region2: #{tpu_custom_call.1} parent=1 // pred_check
      _
    $region3: #{tpu_custom_call.1} parent=1 // pred_check_branch
      %14 = sbr.rel (0) target = $region5
    $region4: #{tpu_custom_call.1} parent=1 // pred_region
      %s16 = ssub.s32 4096, 4096
      %17 = vsyncadd [#allocation7], %s16
      %s18 = sshll.u32 [#allocation6], 4
      %s19 = int_to_ptr.vmem [resolvable:$true] %s18
      %24 = dma.hbm_to_vmem [thread:$0]  %s0, 4096, %s19, [#allocation7], 1024, 1024, 64
    $region5: #{tpu_custom_call.1} parent=1 // pred_fallthru
      _
    // Predicated region
    $region6: #{tpu_custom_call.1} parent=1 // pred_check
      _
    $region7: #{tpu_custom_call.1} parent=1 // pred_check_branch
      %26 = sbr.rel (0) target = $region9
    $region8: #{tpu_custom_call.1} parent=1 // pred_region
      %s28 = ssub.s32 1024, 1024
      %29 = vsyncadd [#allocation10], %s28
      %s31 = sshll.u32 [#allocation9], 4
      %s32 = int_to_ptr.vmem [resolvable:$true] %s31
      %34 = dma.hbm_to_vmem [thread:$0]  %s1, 1024, %s32, [#allocation10]
    $region9: #{tpu_custom_call.1} parent=1 // pred_fallthru
      _
    // Predicated region
    $region10: #{tpu_custom_call.1} parent=1 // pred_check
      _
    $region11: #{tpu_custom_call.1} parent=1 // pred_check_branch
      %36 = sbr.rel (0) target = $region13
    $region12: #{tpu_custom_call.1} parent=1 // pred_region
      %37 = dma.done [#allocation7], 4096
    $region13: #{tpu_custom_call.1} parent=1 // pred_fallthru
      _
    // Predicated region
    $region14: #{tpu_custom_call.1} parent=1 // pred_check
      _
    $region15: #{tpu_custom_call.1} parent=1 // pred_check_branch
      %39 = sbr.rel (0) target = $region17
    $region16: #{tpu_custom_call.1} parent=1 // pred_region
      %40 = dma.done [#allocation10], 1024
    $region17: #{tpu_custom_call.1} parent=1 // pred_fallthru
      _
    %p41 = scmp.eq.s32.totalorder 0, 0
    // Predicated region
    $region18: #{tpu_custom_call.1} parent=1 // pred_check
      %p42 = pneg %p41
    $region19: #{tpu_custom_call.1} parent=1 // pred_check_branch
      %44 = sbr.rel (%p42) target = $region21
    $region20: #{tpu_custom_call.1} parent=1 // pred_region
      %45 = vst [vmem:[#allocation2] sm:$0xff] 0.0
      %46 = vst [vmem:[#allocation2 + $0x8] sm:$0xff] 0.0
      %47 = vst [vmem:[#allocation2 + $0x10] sm:$0xff] 0.0
      %48 = vst [vmem:[#allocation2 + $0x18] sm:$0xff] 0.0
      %49 = vst [vmem:[#allocation2 + $0x20] sm:$0xff] 0.0
      %50 = vst [vmem:[#allocation2 + $0x28] sm:$0xff] 0.0
      %51 = vst [vmem:[#allocation2 + $0x30] sm:$0xff] 0.0
      %52 = vst [vmem:[#allocation2 + $0x38] sm:$0xff] 0.0
      %53 = vst [vmem:[#allocation2 + $0x40] sm:$0xff] 0.0
      %54 = vst [vmem:[#allocation2 + $0x48] sm:$0xff] 0.0
      %55 = vst [vmem:[#allocation2 + $0x50] sm:$0xff] 0.0
      %56 = vst [vmem:[#allocation2 + $0x58] sm:$0xff] 0.0
      %57 = vst [vmem:[#allocation2 + $0x60] sm:$0xff] 0.0
      %58 = vst [vmem:[#allocation2 + $0x68] sm:$0xff] 0.0
      %59 = vst [vmem:[#allocation2 + $0x70] sm:$0xff] 0.0
      %60 = vst [vmem:[#allocation2 + $0x78] sm:$0xff] 0.0
      %61 = vst [vmem:[#allocation3] sm:$0xff] 0.0
      %62 = vst [vmem:[#allocation3 + $0x8] sm:$0xff] 0.0
      %63 = vst [vmem:[#allocation3 + $0x10] sm:$0xff] 0.0
      %64 = vst [vmem:[#allocation3 + $0x18] sm:$0xff] 0.0
      %65 = vst [vmem:[#allocation4] sm:$0xff] 0.0
      %66 = vst [vmem:[#allocation4 + $0x8] sm:$0xff] 0.0
      %67 = vst [vmem:[#allocation4 + $0x10] sm:$0xff] 0.0
      %68 = vst [vmem:[#allocation4 + $0x18] sm:$0xff] 0.0
      %69 = vst [vmem:[#allocation5] sm:$0xff] 0.0
      %70 = vst [vmem:[#allocation5 + $0x8] sm:$0xff] 0.0
      %71 = vst [vmem:[#allocation5 + $0x10] sm:$0xff] 0.0
      %72 = vst [vmem:[#allocation5 + $0x18] sm:$0xff] 0.0
    $region21: #{tpu_custom_call.1} parent=1 // pred_fallthru
      _
    %v73 = vlaneseq
    %v74 = vand.u32 %v73, 127
    %v75 = vadd.s32 %v74, 128
    %v76 = vadd.s32 %v74, 256
    %v77 = vadd.s32 %v74, 384
    %78 = vrot.lane.b32.xlu0 %v74, 1
    %v79 = vpop.permute.xlu0 %78
    %vm80 = vcmp.eq.s32.totalorder %v79, 127
    %v81 = vsel %vm80, 3, 0
    %vm82 = vcmp.lt.s32.totalorder %v74, 0
    %v83 = vsub.s32 0, %v74
    %v84 = vsel %vm82, %v83, %v74
    %v85 = vshrl.u32 %v84, 2
    %v86 = vand.u32 %v84, 3
    %v87 = vsub.s32 0, %v86
    %v88 = vsel %vm82, %v87, %v86
    %vm89 = vcmp.lt.s32.totalorder %v75, 0
    %v90 = vsub.s32 0, %v75
    %v91 = vsel %vm89, %v90, %v75
    %v92 = vshrl.u32 %v91, 2
    %v93 = vand.u32 %v91, 3
    %v94 = vsub.s32 0, %v93
    %v95 = vsel %vm89, %v94, %v93
    %vm96 = vcmp.lt.s32.totalorder %v76, 0
    %v97 = vsub.s32 0, %v76
    %v98 = vsel %vm96, %v97, %v76
    %v99 = vshrl.u32 %v98, 2
    %v100 = vand.u32 %v98, 3
    %v101 = vsub.s32 0, %v100
    %v102 = vsel %vm96, %v101, %v100
    %vm103 = vcmp.lt.s32.totalorder %v77, 0
    %v104 = vsub.s32 0, %v77
    %v105 = vsel %vm103, %v104, %v77
    %v106 = vshrl.u32 %v105, 2
    %v107 = vand.u32 %v105, 3
    %v108 = vsub.s32 0, %v107
    %v109 = vsel %vm103, %v108, %v107
    %vm110 = vcmp.ne.s32.totalorder %v88, 0
    %vm111 = vcmp.ne.s32.totalorder %v95, 0
    %vm112 = vcmp.ne.s32.totalorder %v102, 0
    %vm113 = vcmp.ne.s32.totalorder %v109, 0
    %vm114 = vcmp.lt.s32.totalorder %v88, 0
    %vm115 = vcmp.lt.s32.totalorder %v95, 0
    %vm116 = vcmp.lt.s32.totalorder %v102, 0
    %vm117 = vcmp.lt.s32.totalorder %v109, 0
    %vm118 = vmand %vm114, %vm110
    %vm119 = vmand %vm115, %vm111
    %vm120 = vmand %vm116, %vm112
    %vm121 = vmand %vm117, %vm113
    %v122 = vadd.s32 %v88, 4
    %v123 = vadd.s32 %v95, 4
    %v124 = vadd.s32 %v102, 4
    %v125 = vadd.s32 %v109, 4
    %v126 = vsel %vm118, %v122, %v88
    %v127 = vsel %vm119, %v123, %v95
    %v128 = vsel %vm120, %v124, %v102
    %v129 = vsel %vm121, %v125, %v109
    %s130 = vtos %v81
    %v131 = vstv %s130
    %vm132 = vcmp.eq.s32.totalorder %v126, %v131
    %vm133 = vcmp.eq.s32.totalorder %v127, %v131
    %vm134 = vcmp.eq.s32.totalorder %v128, %v131
    %vm135 = vcmp.eq.s32.totalorder %v129, %v131
    loop: start=0, step=1, limit=2
    $region22: #{tpu_custom_call.1} parent=1 // loop_pre_header
      _
    $region23: #{tpu_custom_call.1} parent=1 // loop_header
      %s137 = sphi 0, %s141
      %p138 = scmp.ge.s32.totalorder %s137, 2
    $region24: #{tpu_custom_call.1} parent=1 // loop_header_branch
      %140 = sbr.rel (%p138) target = $region28
    $region25: #{tpu_custom_call.1} parent=1 // loop_body
      %s142 = smul.u32 %s137, 512
      %s143 = sshra.s32 %s142, 7
      %s144 = sand.u32 %s142, 127
      %s145 = smul.addr %s143, 8
      %s146 = scalar_lea.vmem [#allocation9], %s145
      %v147 = vld [vmem:[%s146] sm:$0xff]
      %v148 = vld [vmem:[%s146 + $0x8] sm:$0xff]
      %v149 = vld [vmem:[%s146 + $0x10] sm:$0xff]
      %v150 = vld [vmem:[%s146 + $0x18] sm:$0xff]
      %s151 = smul.addr %s143, 8
      %s152 = scalar_lea.vmem [#allocation6], %s151
      %v153 = vld [vmem:[%s152] sm:$0xff]
      %v154 = vld [vmem:[%s152 + $0x8] sm:$0xff]
      %v155 = vld [vmem:[%s152 + $0x10] sm:$0xff]
      %v156 = vld [vmem:[%s152 + $0x18] sm:$0xff]
      %v157 = vsub.f32 %v153, %v147
      %v158 = vsub.f32 %v154, %v148
      %v159 = vsub.f32 %v155, %v149
      %v160 = vsub.f32 %v156, %v150
      %v161 = vld [vmem:[#allocation2] sm:$0xff]
      %v162 = vld [vmem:[#allocation2 + $0x8] sm:$0xff]
      %v163 = vld [vmem:[#allocation2 + $0x10] sm:$0xff]
      %v164 = vld [vmem:[#allocation2 + $0x18] sm:$0xff]
      %v165 = vmul.f32 %v157, %v157
      %v166 = vmul.f32 %v158, %v158
      %v167 = vmul.f32 %v159, %v159
      %v168 = vmul.f32 %v160, %v160
      %v169 = vadd.f32 %v161, %v165
      %v170 = vadd.f32 %v162, %v166
      %v171 = vadd.f32 %v163, %v167
      %v172 = vadd.f32 %v164, %v168
      %173 = vst [vmem:[#allocation2] sm:$0xff] %v169
      %174 = vst [vmem:[#allocation2 + $0x8] sm:$0xff] %v170
      %175 = vst [vmem:[#allocation2 + $0x10] sm:$0xff] %v171
      %176 = vst [vmem:[#allocation2 + $0x18] sm:$0xff] %v172
      %v177 = vadd.f32 %v153, 0.0
      %v178 = vadd.f32 %v154, 0.0
      %v179 = vadd.f32 %v155, 0.0
      %v180 = vadd.f32 %v156, 0.0
      %v181 = vmul.f32 %v153, %v153
      %v182 = vmul.f32 %v154, %v154
      %v183 = vmul.f32 %v155, %v155
      %v184 = vmul.f32 %v156, %v156
      %v185 = vadd.f32 %v181, 0.0
      %v186 = vadd.f32 %v182, 0.0
      %v187 = vadd.f32 %v183, 0.0
      %v188 = vadd.f32 %v184, 0.0
      %s189 = sadd.s32 %s143, 8
      %s190 = smul.addr %s189, 8
      %s191 = scalar_lea.vmem [#allocation6], %s190
      %v192 = vld [vmem:[%s191] sm:$0xff]
      %v193 = vld [vmem:[%s191 + $0x8] sm:$0xff]
      %v194 = vld [vmem:[%s191 + $0x10] sm:$0xff]
      %v195 = vld [vmem:[%s191 + $0x18] sm:$0xff]
      %v196 = vsub.f32 %v192, %v147
      %v197 = vsub.f32 %v193, %v148
      %v198 = vsub.f32 %v194, %v149
      %v199 = vsub.f32 %v195, %v150
      %s200 = scalar_lea.vmem [#allocation2], 32
      %v201 = vld [vmem:[%s200] sm:$0xff]
      %v202 = vld [vmem:[%s200 + $0x8] sm:$0xff]
      %v203 = vld [vmem:[%s200 + $0x10] sm:$0xff]
      %v204 = vld [vmem:[%s200 + $0x18] sm:$0xff]
      %v205 = vmul.f32 %v196, %v196
      %v206 = vmul.f32 %v197, %v197
      %v207 = vmul.f32 %v198, %v198
      %v208 = vmul.f32 %v199, %v199
      %v209 = vadd.f32 %v201, %v205
      %v210 = vadd.f32 %v202, %v206
      %v211 = vadd.f32 %v203, %v207
      %v212 = vadd.f32 %v204, %v208
      %213 = vst [vmem:[%s200] sm:$0xff] %v209
      %214 = vst [vmem:[%s200 + $0x8] sm:$0xff] %v210
      %215 = vst [vmem:[%s200 + $0x10] sm:$0xff] %v211
      %216 = vst [vmem:[%s200 + $0x18] sm:$0xff] %v212
      %v217 = vadd.f32 %v177, %v192
      %v218 = vadd.f32 %v178, %v193
      %v219 = vadd.f32 %v179, %v194
      %v220 = vadd.f32 %v180, %v195
      %v221 = vmul.f32 %v192, %v192
      %v222 = vmul.f32 %v193, %v193
      %v223 = vmul.f32 %v194, %v194
      %v224 = vmul.f32 %v195, %v195
      %v225 = vadd.f32 %v185, %v221
      %v226 = vadd.f32 %v186, %v222
      %v227 = vadd.f32 %v187, %v223
      %v228 = vadd.f32 %v188, %v224
      %s229 = sadd.s32 %s143, 16
      %s230 = smul.addr %s229, 8
      %s231 = scalar_lea.vmem [#allocation6], %s230
      %v232 = vld [vmem:[%s231] sm:$0xff]
      %v233 = vld [vmem:[%s231 + $0x8] sm:$0xff]
      %v234 = vld [vmem:[%s231 + $0x10] sm:$0xff]
      %v235 = vld [vmem:[%s231 + $0x18] sm:$0xff]
      %v236 = vsub.f32 %v232, %v147
      %v237 = vsub.f32 %v233, %v148
      %v238 = vsub.f32 %v234, %v149
      %v239 = vsub.f32 %v235, %v150
      %s240 = scalar_lea.vmem [#allocation2], 64
      %v241 = vld [vmem:[%s240] sm:$0xff]
      %v242 = vld [vmem:[%s240 + $0x8] sm:$0xff]
      %v243 = vld [vmem:[%s240 + $0x10] sm:$0xff]
      %v244 = vld [vmem:[%s240 + $0x18] sm:$0xff]
      %v245 = vmul.f32 %v236, %v236
      %v246 = vmul.f32 %v237, %v237
      %v247 = vmul.f32 %v238, %v238
      %v248 = vmul.f32 %v239, %v239
      %v249 = vadd.f32 %v241, %v245
      %v250 = vadd.f32 %v242, %v246
      %v251 = vadd.f32 %v243, %v247
      %v252 = vadd.f32 %v244, %v248
      %253 = vst [vmem:[%s240] sm:$0xff] %v249
      %254 = vst [vmem:[%s240 + $0x8] sm:$0xff] %v250
      %255 = vst [vmem:[%s240 + $0x10] sm:$0xff] %v251
      %256 = vst [vmem:[%s240 + $0x18] sm:$0xff] %v252
      %v257 = vadd.f32 %v217, %v232
      %v258 = vadd.f32 %v218, %v233
      %v259 = vadd.f32 %v219, %v234
      %v260 = vadd.f32 %v220, %v235
      %v261 = vmul.f32 %v232, %v232
      %v262 = vmul.f32 %v233, %v233
      %v263 = vmul.f32 %v234, %v234
      %v264 = vmul.f32 %v235, %v235
      %v265 = vadd.f32 %v225, %v261
      %v266 = vadd.f32 %v226, %v262
      %v267 = vadd.f32 %v227, %v263
      %v268 = vadd.f32 %v228, %v264
      %s269 = sadd.s32 %s143, 24
      %s270 = smul.addr %s269, 8
      %s271 = scalar_lea.vmem [#allocation6], %s270
      %v272 = vld [vmem:[%s271] sm:$0xff]
      %v273 = vld [vmem:[%s271 + $0x8] sm:$0xff]
      %v274 = vld [vmem:[%s271 + $0x10] sm:$0xff]
      %v275 = vld [vmem:[%s271 + $0x18] sm:$0xff]
      %v276 = vsub.f32 %v272, %v147
      %v277 = vsub.f32 %v273, %v148
      %v278 = vsub.f32 %v274, %v149
      %v279 = vsub.f32 %v275, %v150
      %s280 = scalar_lea.vmem [#allocation2], 96
      %v281 = vld [vmem:[%s280] sm:$0xff]
      %v282 = vld [vmem:[%s280 + $0x8] sm:$0xff]
      %v283 = vld [vmem:[%s280 + $0x10] sm:$0xff]
      %v284 = vld [vmem:[%s280 + $0x18] sm:$0xff]
      %v285 = vmul.f32 %v276, %v276
      %v286 = vmul.f32 %v277, %v277
      %v287 = vmul.f32 %v278, %v278
      %v288 = vmul.f32 %v279, %v279
      %v289 = vadd.f32 %v281, %v285
      %v290 = vadd.f32 %v282, %v286
      %v291 = vadd.f32 %v283, %v287
      %v292 = vadd.f32 %v284, %v288
      %293 = vst [vmem:[%s280] sm:$0xff] %v289
      %294 = vst [vmem:[%s280 + $0x8] sm:$0xff] %v290
      %295 = vst [vmem:[%s280 + $0x10] sm:$0xff] %v291
      %296 = vst [vmem:[%s280 + $0x18] sm:$0xff] %v292
      %v297 = vadd.f32 %v257, %v272
      %v298 = vadd.f32 %v258, %v273
      %v299 = vadd.f32 %v259, %v274
      %v300 = vadd.f32 %v260, %v275
      %v301 = vmul.f32 %v272, %v272
      %v302 = vmul.f32 %v273, %v273
      %v303 = vmul.f32 %v274, %v274
      %v304 = vmul.f32 %v275, %v275
      %v305 = vadd.f32 %v265, %v301
      %v306 = vadd.f32 %v266, %v302
      %v307 = vadd.f32 %v267, %v303
      %v308 = vadd.f32 %v268, %v304
      %v309 = vsub.f32 %v153, %v192
      %v310 = vsub.f32 %v154, %v193
      %v311 = vsub.f32 %v155, %v194
      %v312 = vsub.f32 %v156, %v195
      %v313 = vmul.f32 %v309, %v309
      %v314 = vmul.f32 %v310, %v310
      %v315 = vmul.f32 %v311, %v311
      %v316 = vmul.f32 %v312, %v312
      %317 = vrot.lane.b32.xlu0 %v313, 1
      %v318 = vpop.permute.xlu0 %317
      %319 = vrot.lane.b32.xlu0 %v314, 1
      %v320 = vpop.permute.xlu0 %319
      %321 = vrot.lane.b32.xlu0 %v315, 1
      %v322 = vpop.permute.xlu0 %321
      %323 = vrot.lane.b32.xlu0 %v316, 1
      %v324 = vpop.permute.xlu0 %323
      %vm325 = vcmp.lt.s32.totalorder %v74, 1
      %v326 = vsel %vm325, %v322, %v324
      %v327 = vsel %vm325, %v320, %v322
      %v328 = vsel %vm325, %v318, %v320
      %v329 = vsel %vm325, %v324, %v318
      %v330 = vadd.f32 %v313, %v329
      %v331 = vadd.f32 %v314, %v328
      %v332 = vadd.f32 %v315, %v327
      %v333 = vadd.f32 %v316, %v326
      %334 = vrot.lane.b32.xlu0 %v330, 2
      %v335 = vpop.permute.xlu0 %334
      %336 = vrot.lane.b32.xlu0 %v331, 2
      %v337 = vpop.permute.xlu0 %336
      %338 = vrot.lane.b32.xlu0 %v332, 2
      %v339 = vpop.permute.xlu0 %338
      %340 = vrot.lane.b32.xlu0 %v333, 2
      %v341 = vpop.permute.xlu0 %340
      %vm342 = vcmp.lt.s32.totalorder %v74, 2
      %v343 = vsel %vm342, %v339, %v341
      %v344 = vsel %vm342, %v337, %v339
      %v345 = vsel %vm342, %v335, %v337
      %v346 = vsel %vm342, %v341, %v335
      %v347 = vadd.f32 %v330, %v346
      %v348 = vadd.f32 %v331, %v345
      %v349 = vadd.f32 %v332, %v344
      %v350 = vadd.f32 %v333, %v343
      %v351 = vmax.f32 %v347, 0.0
      %v352 = vmax.f32 %v348, 0.0
      %v353 = vmax.f32 %v349, 0.0
      %v354 = vmax.f32 %v350, 0.0
      %v355 = vrsqrt.pop %v351
      %v356 = vmul.f32 %v351, %v355
      %vm357 = vcmp.eq.f32.partialorder %v351, inf
      %v358 = vsel %vm357, %v351, %v356
      %vm359 = vcmp.eq.f32.partialorder %v351, 0.0
      %v360 = vand.u32 %v351, 2147483648
      %v361 = vsel %vm359, %v360, %v358
      %v362 = vrsqrt.pop %v352
      %v363 = vmul.f32 %v352, %v362
      %vm364 = vcmp.eq.f32.partialorder %v352, inf
      %v365 = vsel %vm364, %v352, %v363
      %vm366 = vcmp.eq.f32.partialorder %v352, 0.0
      %v367 = vand.u32 %v352, 2147483648
      %v368 = vsel %vm366, %v367, %v365
      %v369 = vrsqrt.pop %v353
      %v370 = vmul.f32 %v353, %v369
      %vm371 = vcmp.eq.f32.partialorder %v353, inf
      %v372 = vsel %vm371, %v353, %v370
      %vm373 = vcmp.eq.f32.partialorder %v353, 0.0
      %v374 = vand.u32 %v353, 2147483648
      %v375 = vsel %vm373, %v374, %v372
      %v376 = vrsqrt.pop %v354
      %v377 = vmul.f32 %v354, %v376
      %vm378 = vcmp.eq.f32.partialorder %v354, inf
      %v379 = vsel %vm378, %v354, %v377
      %vm380 = vcmp.eq.f32.partialorder %v354, 0.0
      %v381 = vand.u32 %v354, 2147483648
      %v382 = vsel %vm380, %v381, %v379
      %v383 = vadd.f32 %v361, 0.0
      %v384 = vadd.f32 %v368, 0.0
      %v385 = vadd.f32 %v375, 0.0
      %v386 = vadd.f32 %v382, 0.0
      %v387 = vsub.f32 %v153, %v232
      %v388 = vsub.f32 %v154, %v233
      %v389 = vsub.f32 %v155, %v234
      %v390 = vsub.f32 %v156, %v235
      %v391 = vmul.f32 %v387, %v387
      %v392 = vmul.f32 %v388, %v388
      %v393 = vmul.f32 %v389, %v389
      %v394 = vmul.f32 %v390, %v390
      %395 = vrot.lane.b32.xlu0 %v391, 1
      %v396 = vpop.permute.xlu0 %395
      %397 = vrot.lane.b32.xlu0 %v392, 1
      %v398 = vpop.permute.xlu0 %397
      %399 = vrot.lane.b32.xlu0 %v393, 1
      %v400 = vpop.permute.xlu0 %399
      %401 = vrot.lane.b32.xlu0 %v394, 1
      %v402 = vpop.permute.xlu0 %401
      %v403 = vsel %vm325, %v400, %v402
      %v404 = vsel %vm325, %v398, %v400
      %v405 = vsel %vm325, %v396, %v398
      %v406 = vsel %vm325, %v402, %v396
      %v407 = vadd.f32 %v391, %v406
      %v408 = vadd.f32 %v392, %v405
      %v409 = vadd.f32 %v393, %v404
      %v410 = vadd.f32 %v394, %v403
      %411 = vrot.lane.b32.xlu0 %v407, 2
      %v412 = vpop.permute.xlu0 %411
      %413 = vrot.lane.b32.xlu0 %v408, 2
      %v414 = vpop.permute.xlu0 %413
      %415 = vrot.lane.b32.xlu0 %v409, 2
      %v416 = vpop.permute.xlu0 %415
      %417 = vrot.lane.b32.xlu0 %v410, 2
      %v418 = vpop.permute.xlu0 %417
      %v419 = vsel %vm342, %v416, %v418
      %v420 = vsel %vm342, %v414, %v416
      %v421 = vsel %vm342, %v412, %v414
      %v422 = vsel %vm342, %v418, %v412
      %v423 = vadd.f32 %v407, %v422
      %v424 = vadd.f32 %v408, %v421
      %v425 = vadd.f32 %v409, %v420
      %v426 = vadd.f32 %v410, %v419
      %v427 = vmax.f32 %v423, 0.0
      %v428 = vmax.f32 %v424, 0.0
      %v429 = vmax.f32 %v425, 0.0
      %v430 = vmax.f32 %v426, 0.0
      %v431 = vrsqrt.pop %v427
      %v432 = vmul.f32 %v427, %v431
      %vm433 = vcmp.eq.f32.partialorder %v427, inf
      %v434 = vsel %vm433, %v427, %v432
      %vm435 = vcmp.eq.f32.partialorder %v427, 0.0
      %v436 = vand.u32 %v427, 2147483648
      %v437 = vsel %vm435, %v436, %v434
      %v438 = vrsqrt.pop %v428
      %v439 = vmul.f32 %v428, %v438
      %vm440 = vcmp.eq.f32.partialorder %v428, inf
      %v441 = vsel %vm440, %v428, %v439
      %vm442 = vcmp.eq.f32.partialorder %v428, 0.0
      %v443 = vand.u32 %v428, 2147483648
      %v444 = vsel %vm442, %v443, %v441
      %v445 = vrsqrt.pop %v429
      %v446 = vmul.f32 %v429, %v445
      %vm447 = vcmp.eq.f32.partialorder %v429, inf
      %v448 = vsel %vm447, %v429, %v446
      %vm449 = vcmp.eq.f32.partialorder %v429, 0.0
      %v450 = vand.u32 %v429, 2147483648
      %v451 = vsel %vm449, %v450, %v448
      %v452 = vrsqrt.pop %v430
      %v453 = vmul.f32 %v430, %v452
      %vm454 = vcmp.eq.f32.partialorder %v430, inf
      %v455 = vsel %vm454, %v430, %v453
      %vm456 = vcmp.eq.f32.partialorder %v430, 0.0
      %v457 = vand.u32 %v430, 2147483648
      %v458 = vsel %vm456, %v457, %v455
      %v459 = vadd.f32 %v383, %v437
      %v460 = vadd.f32 %v384, %v444
      %v461 = vadd.f32 %v385, %v451
      %v462 = vadd.f32 %v386, %v458
      %v463 = vsub.f32 %v153, %v272
      %v464 = vsub.f32 %v154, %v273
      %v465 = vsub.f32 %v155, %v274
      %v466 = vsub.f32 %v156, %v275
      %v467 = vmul.f32 %v463, %v463
      %v468 = vmul.f32 %v464, %v464
      %v469 = vmul.f32 %v465, %v465
      %v470 = vmul.f32 %v466, %v466
      %471 = vrot.lane.b32.xlu0 %v467, 1
      %v472 = vpop.permute.xlu0 %471
      %473 = vrot.lane.b32.xlu0 %v468, 1
      %v474 = vpop.permute.xlu0 %473
      %475 = vrot.lane.b32.xlu0 %v469, 1
      %v476 = vpop.permute.xlu0 %475
      %477 = vrot.lane.b32.xlu0 %v470, 1
      %v478 = vpop.permute.xlu0 %477
      %v479 = vsel %vm325, %v476, %v478
      %v480 = vsel %vm325, %v474, %v476
      %v481 = vsel %vm325, %v472, %v474
      %v482 = vsel %vm325, %v478, %v472
      %v483 = vadd.f32 %v467, %v482
      %v484 = vadd.f32 %v468, %v481
      %v485 = vadd.f32 %v469, %v480
      %v486 = vadd.f32 %v470, %v479
      %487 = vrot.lane.b32.xlu0 %v483, 2
      %v488 = vpop.permute.xlu0 %487
      %489 = vrot.lane.b32.xlu0 %v484, 2
      %v490 = vpop.permute.xlu0 %489
      %491 = vrot.lane.b32.xlu0 %v485, 2
      %v492 = vpop.permute.xlu0 %491
      %493 = vrot.lane.b32.xlu0 %v486, 2
      %v494 = vpop.permute.xlu0 %493
      %v495 = vsel %vm342, %v492, %v494
      %v496 = vsel %vm342, %v490, %v492
      %v497 = vsel %vm342, %v488, %v490
      %v498 = vsel %vm342, %v494, %v488
      %v499 = vadd.f32 %v483, %v498
      %v500 = vadd.f32 %v484, %v497
      %v501 = vadd.f32 %v485, %v496
      %v502 = vadd.f32 %v486, %v495
      %v503 = vmax.f32 %v499, 0.0
      %v504 = vmax.f32 %v500, 0.0
      %v505 = vmax.f32 %v501, 0.0
      %v506 = vmax.f32 %v502, 0.0
      %v507 = vrsqrt.pop %v503
      %v508 = vmul.f32 %v503, %v507
      %vm509 = vcmp.eq.f32.partialorder %v503, inf
      %v510 = vsel %vm509, %v503, %v508
      %vm511 = vcmp.eq.f32.partialorder %v503, 0.0
      %v512 = vand.u32 %v503, 2147483648
      %v513 = vsel %vm511, %v512, %v510
      %v514 = vrsqrt.pop %v504
      %v515 = vmul.f32 %v504, %v514
      %vm516 = vcmp.eq.f32.partialorder %v504, inf
      %v517 = vsel %vm516, %v504, %v515
      %vm518 = vcmp.eq.f32.partialorder %v504, 0.0
      %v519 = vand.u32 %v504, 2147483648
      %v520 = vsel %vm518, %v519, %v517
      %v521 = vrsqrt.pop %v505
      %v522 = vmul.f32 %v505, %v521
      %vm523 = vcmp.eq.f32.partialorder %v505, inf
      %v524 = vsel %vm523, %v505, %v522
      %vm525 = vcmp.eq.f32.partialorder %v505, 0.0
      %v526 = vand.u32 %v505, 2147483648
      %v527 = vsel %vm525, %v526, %v524
      %v528 = vrsqrt.pop %v506
      %v529 = vmul.f32 %v506, %v528
      %vm530 = vcmp.eq.f32.partialorder %v506, inf
      %v531 = vsel %vm530, %v506, %v529
      %vm532 = vcmp.eq.f32.partialorder %v506, 0.0
      %v533 = vand.u32 %v506, 2147483648
      %v534 = vsel %vm532, %v533, %v531
      %v535 = vadd.f32 %v459, %v513
      %v536 = vadd.f32 %v460, %v520
      %v537 = vadd.f32 %v461, %v527
      %v538 = vadd.f32 %v462, %v534
      %v539 = vsub.f32 %v192, %v232
      %v540 = vsub.f32 %v193, %v233
      %v541 = vsub.f32 %v194, %v234
      %v542 = vsub.f32 %v195, %v235
      %v543 = vmul.f32 %v539, %v539
      %v544 = vmul.f32 %v540, %v540
      %v545 = vmul.f32 %v541, %v541
      %v546 = vmul.f32 %v542, %v542
      %547 = vrot.lane.b32.xlu0 %v543, 1
      %v548 = vpop.permute.xlu0 %547
      %549 = vrot.lane.b32.xlu0 %v544, 1
      %v550 = vpop.permute.xlu0 %549
      %551 = vrot.lane.b32.xlu0 %v545, 1
      %v552 = vpop.permute.xlu0 %551
      %553 = vrot.lane.b32.xlu0 %v546, 1
      %v554 = vpop.permute.xlu0 %553
      %v555 = vsel %vm325, %v552, %v554
      %v556 = vsel %vm325, %v550, %v552
      %v557 = vsel %vm325, %v548, %v550
      %v558 = vsel %vm325, %v554, %v548
      %v559 = vadd.f32 %v543, %v558
      %v560 = vadd.f32 %v544, %v557
      %v561 = vadd.f32 %v545, %v556
      %v562 = vadd.f32 %v546, %v555
      %563 = vrot.lane.b32.xlu0 %v559, 2
      %v564 = vpop.permute.xlu0 %563
      %565 = vrot.lane.b32.xlu0 %v560, 2
      %v566 = vpop.permute.xlu0 %565
      %567 = vrot.lane.b32.xlu0 %v561, 2
      %v568 = vpop.permute.xlu0 %567
      %569 = vrot.lane.b32.xlu0 %v562, 2
      %v570 = vpop.permute.xlu0 %569
      %v571 = vsel %vm342, %v568, %v570
      %v572 = vsel %vm342, %v566, %v568
      %v573 = vsel %vm342, %v564, %v566
      %v574 = vsel %vm342, %v570, %v564
      %v575 = vadd.f32 %v559, %v574
      %v576 = vadd.f32 %v560, %v573
      %v577 = vadd.f32 %v561, %v572
      %v578 = vadd.f32 %v562, %v571
      %v579 = vmax.f32 %v575, 0.0
      %v580 = vmax.f32 %v576, 0.0
      %v581 = vmax.f32 %v577, 0.0
      %v582 = vmax.f32 %v578, 0.0
      %v583 = vrsqrt.pop %v579
      %v584 = vmul.f32 %v579, %v583
      %vm585 = vcmp.eq.f32.partialorder %v579, inf
      %v586 = vsel %vm585, %v579, %v584
      %vm587 = vcmp.eq.f32.partialorder %v579, 0.0
      %v588 = vand.u32 %v579, 2147483648
      %v589 = vsel %vm587, %v588, %v586
      %v590 = vrsqrt.pop %v580
      %v591 = vmul.f32 %v580, %v590
      %vm592 = vcmp.eq.f32.partialorder %v580, inf
      %v593 = vsel %vm592, %v580, %v591
      %vm594 = vcmp.eq.f32.partialorder %v580, 0.0
      %v595 = vand.u32 %v580, 2147483648
      %v596 = vsel %vm594, %v595, %v593
      %v597 = vrsqrt.pop %v581
      %v598 = vmul.f32 %v581, %v597
      %vm599 = vcmp.eq.f32.partialorder %v581, inf
      %v600 = vsel %vm599, %v581, %v598
      %vm601 = vcmp.eq.f32.partialorder %v581, 0.0
      %v602 = vand.u32 %v581, 2147483648
      %v603 = vsel %vm601, %v602, %v600
      %v604 = vrsqrt.pop %v582
      %v605 = vmul.f32 %v582, %v604
      %vm606 = vcmp.eq.f32.partialorder %v582, inf
      %v607 = vsel %vm606, %v582, %v605
      %vm608 = vcmp.eq.f32.partialorder %v582, 0.0
      %v609 = vand.u32 %v582, 2147483648
      %v610 = vsel %vm608, %v609, %v607
      %v611 = vadd.f32 %v535, %v589
      %v612 = vadd.f32 %v536, %v596
      %v613 = vadd.f32 %v537, %v603
      %v614 = vadd.f32 %v538, %v610
      %v615 = vsub.f32 %v192, %v272
      %v616 = vsub.f32 %v193, %v273
      %v617 = vsub.f32 %v194, %v274
      %v618 = vsub.f32 %v195, %v275
      %v619 = vmul.f32 %v615, %v615
      %v620 = vmul.f32 %v616, %v616
      %v621 = vmul.f32 %v617, %v617
      %v622 = vmul.f32 %v618, %v618
      %623 = vrot.lane.b32.xlu0 %v619, 1
      %v624 = vpop.permute.xlu0 %623
      %625 = vrot.lane.b32.xlu0 %v620, 1
      %v626 = vpop.permute.xlu0 %625
      %627 = vrot.lane.b32.xlu0 %v621, 1
      %v628 = vpop.permute.xlu0 %627
      %629 = vrot.lane.b32.xlu0 %v622, 1
      %v630 = vpop.permute.xlu0 %629
      %v631 = vsel %vm325, %v628, %v630
      %v632 = vsel %vm325, %v626, %v628
      %v633 = vsel %vm325, %v624, %v626
      %v634 = vsel %vm325, %v630, %v624
      %v635 = vadd.f32 %v619, %v634
      %v636 = vadd.f32 %v620, %v633
      %v637 = vadd.f32 %v621, %v632
      %v638 = vadd.f32 %v622, %v631
      %639 = vrot.lane.b32.xlu0 %v635, 2
      %v640 = vpop.permute.xlu0 %639
      %641 = vrot.lane.b32.xlu0 %v636, 2
      %v642 = vpop.permute.xlu0 %641
      %643 = vrot.lane.b32.xlu0 %v637, 2
      %v644 = vpop.permute.xlu0 %643
      %645 = vrot.lane.b32.xlu0 %v638, 2
      %v646 = vpop.permute.xlu0 %645
      %v647 = vsel %vm342, %v644, %v646
      %v648 = vsel %vm342, %v642, %v644
      %v649 = vsel %vm342, %v640, %v642
      %v650 = vsel %vm342, %v646, %v640
      %v651 = vadd.f32 %v635, %v650
      %v652 = vadd.f32 %v636, %v649
      %v653 = vadd.f32 %v637, %v648
      %v654 = vadd.f32 %v638, %v647
      %v655 = vmax.f32 %v651, 0.0
      %v656 = vmax.f32 %v652, 0.0
      %v657 = vmax.f32 %v653, 0.0
      %v658 = vmax.f32 %v654, 0.0
      %v659 = vrsqrt.pop %v655
      %v660 = vmul.f32 %v655, %v659
      %vm661 = vcmp.eq.f32.partialorder %v655, inf
      %v662 = vsel %vm661, %v655, %v660
      %vm663 = vcmp.eq.f32.partialorder %v655, 0.0
      %v664 = vand.u32 %v655, 2147483648
      %v665 = vsel %vm663, %v664, %v662
      %v666 = vrsqrt.pop %v656
      %v667 = vmul.f32 %v656, %v666
      %vm668 = vcmp.eq.f32.partialorder %v656, inf
      %v669 = vsel %vm668, %v656, %v667
      %vm670 = vcmp.eq.f32.partialorder %v656, 0.0
      %v671 = vand.u32 %v656, 2147483648
      %v672 = vsel %vm670, %v671, %v669
      %v673 = vrsqrt.pop %v657
      %v674 = vmul.f32 %v657, %v673
      %vm675 = vcmp.eq.f32.partialorder %v657, inf
      %v676 = vsel %vm675, %v657, %v674
      %vm677 = vcmp.eq.f32.partialorder %v657, 0.0
      %v678 = vand.u32 %v657, 2147483648
      %v679 = vsel %vm677, %v678, %v676
      %v680 = vrsqrt.pop %v658
      %v681 = vmul.f32 %v658, %v680
      %vm682 = vcmp.eq.f32.partialorder %v658, inf
      %v683 = vsel %vm682, %v658, %v681
      %vm684 = vcmp.eq.f32.partialorder %v658, 0.0
      %v685 = vand.u32 %v658, 2147483648
      %v686 = vsel %vm684, %v685, %v683
      %v687 = vadd.f32 %v611, %v665
      %v688 = vadd.f32 %v612, %v672
      %v689 = vadd.f32 %v613, %v679
      %v690 = vadd.f32 %v614, %v686
      %v691 = vsub.f32 %v232, %v272
      %v692 = vsub.f32 %v233, %v273
      %v693 = vsub.f32 %v234, %v274
      %v694 = vsub.f32 %v235, %v275
      %v695 = vmul.f32 %v691, %v691
      %v696 = vmul.f32 %v692, %v692
      %v697 = vmul.f32 %v693, %v693
      %v698 = vmul.f32 %v694, %v694
      %699 = vrot.lane.b32.xlu0 %v695, 1
      %v700 = vpop.permute.xlu0 %699
      %701 = vrot.lane.b32.xlu0 %v696, 1
      %v702 = vpop.permute.xlu0 %701
      %703 = vrot.lane.b32.xlu0 %v697, 1
      %v704 = vpop.permute.xlu0 %703
      %705 = vrot.lane.b32.xlu0 %v698, 1
      %v706 = vpop.permute.xlu0 %705
      %v707 = vsel %vm325, %v704, %v706
      %v708 = vsel %vm325, %v702, %v704
      %v709 = vsel %vm325, %v700, %v702
      %v710 = vsel %vm325, %v706, %v700
      %v711 = vadd.f32 %v695, %v710
      %v712 = vadd.f32 %v696, %v709
      %v713 = vadd.f32 %v697, %v708
      %v714 = vadd.f32 %v698, %v707
      %715 = vrot.lane.b32.xlu0 %v711, 2
      %v716 = vpop.permute.xlu0 %715
      %717 = vrot.lane.b32.xlu0 %v712, 2
      %v718 = vpop.permute.xlu0 %717
      %719 = vrot.lane.b32.xlu0 %v713, 2
      %v720 = vpop.permute.xlu0 %719
      %721 = vrot.lane.b32.xlu0 %v714, 2
      %v722 = vpop.permute.xlu0 %721
      %v723 = vsel %vm342, %v720, %v722
      %v724 = vsel %vm342, %v718, %v720
      %v725 = vsel %vm342, %v716, %v718
      %v726 = vsel %vm342, %v722, %v716
      %v727 = vadd.f32 %v711, %v726
      %v728 = vadd.f32 %v712, %v725
      %v729 = vadd.f32 %v713, %v724
      %v730 = vadd.f32 %v714, %v723
      %v731 = vmax.f32 %v727, 0.0
      %v732 = vmax.f32 %v728, 0.0
      %v733 = vmax.f32 %v729, 0.0
      %v734 = vmax.f32 %v730, 0.0
      %v735 = vrsqrt.pop %v731
      %v736 = vmul.f32 %v731, %v735
      %vm737 = vcmp.eq.f32.partialorder %v731, inf
      %v738 = vsel %vm737, %v731, %v736
      %vm739 = vcmp.eq.f32.partialorder %v731, 0.0
      %v740 = vand.u32 %v731, 2147483648
      %v741 = vsel %vm739, %v740, %v738
      %v742 = vrsqrt.pop %v732
      %v743 = vmul.f32 %v732, %v742
      %vm744 = vcmp.eq.f32.partialorder %v732, inf
      %v745 = vsel %vm744, %v732, %v743
      %vm746 = vcmp.eq.f32.partialorder %v732, 0.0
      %v747 = vand.u32 %v732, 2147483648
      %v748 = vsel %vm746, %v747, %v745
      %v749 = vrsqrt.pop %v733
      %v750 = vmul.f32 %v733, %v749
      %vm751 = vcmp.eq.f32.partialorder %v733, inf
      %v752 = vsel %vm751, %v733, %v750
      %vm753 = vcmp.eq.f32.partialorder %v733, 0.0
      %v754 = vand.u32 %v733, 2147483648
      %v755 = vsel %vm753, %v754, %v752
      %v756 = vrsqrt.pop %v734
      %v757 = vmul.f32 %v734, %v756
      %vm758 = vcmp.eq.f32.partialorder %v734, inf
      %v759 = vsel %vm758, %v734, %v757
      %vm760 = vcmp.eq.f32.partialorder %v734, 0.0
      %v761 = vand.u32 %v734, 2147483648
      %v762 = vsel %vm760, %v761, %v759
      %v763 = vadd.f32 %v687, %v741
      %v764 = vadd.f32 %v688, %v748
      %v765 = vadd.f32 %v689, %v755
      %v766 = vadd.f32 %v690, %v762
      %v767 = vld [vmem:[#allocation5] sm:$0xff]
      %v768 = vld [vmem:[#allocation5 + $0x8] sm:$0xff]
      %v769 = vld [vmem:[#allocation5 + $0x10] sm:$0xff]
      %v770 = vld [vmem:[#allocation5 + $0x18] sm:$0xff]
      %v771 = vsel %vm132, %v763, 0.0
      %v772 = vsel %vm133, %v764, 0.0
      %v773 = vsel %vm134, %v765, 0.0
      %v774 = vsel %vm135, %v766, 0.0
      %v775 = vadd.f32 %v767, %v771
      %v776 = vadd.f32 %v768, %v772
      %v777 = vadd.f32 %v769, %v773
      %v778 = vadd.f32 %v770, %v774
      %779 = vst [vmem:[#allocation5] sm:$0xff] %v775
      %780 = vst [vmem:[#allocation5 + $0x8] sm:$0xff] %v776
      %781 = vst [vmem:[#allocation5 + $0x10] sm:$0xff] %v777
      %782 = vst [vmem:[#allocation5 + $0x18] sm:$0xff] %v778
      %v783 = vmul.f32 %v297, 0.25
      %v784 = vmul.f32 %v298, 0.25
      %v785 = vmul.f32 %v299, 0.25
      %v786 = vmul.f32 %v300, 0.25
      %v787 = vsub.f32 %v783, %v147
      %v788 = vsub.f32 %v784, %v148
      %v789 = vsub.f32 %v785, %v149
      %v790 = vsub.f32 %v786, %v150
      %v791 = vmul.f32 %v787, %v787
      %v792 = vmul.f32 %v788, %v788
      %v793 = vmul.f32 %v789, %v789
      %v794 = vmul.f32 %v790, %v790
      %v795 = vld [vmem:[#allocation3] sm:$0xff]
      %v796 = vld [vmem:[#allocation3 + $0x8] sm:$0xff]
      %v797 = vld [vmem:[#allocation3 + $0x10] sm:$0xff]
      %v798 = vld [vmem:[#allocation3 + $0x18] sm:$0xff]
      %v799 = vadd.f32 %v795, %v791
      %v800 = vadd.f32 %v796, %v792
      %v801 = vadd.f32 %v797, %v793
      %v802 = vadd.f32 %v798, %v794
      %803 = vst [vmem:[#allocation3] sm:$0xff] %v799
      %804 = vst [vmem:[#allocation3 + $0x8] sm:$0xff] %v800
      %805 = vst [vmem:[#allocation3 + $0x10] sm:$0xff] %v801
      %806 = vst [vmem:[#allocation3 + $0x18] sm:$0xff] %v802
      %v807 = vmul.f32 %v297, %v783
      %v808 = vmul.f32 %v298, %v784
      %v809 = vmul.f32 %v299, %v785
      %v810 = vmul.f32 %v300, %v786
      %v811 = vsub.f32 %v305, %v807
      %v812 = vsub.f32 %v306, %v808
      %v813 = vsub.f32 %v307, %v809
      %v814 = vsub.f32 %v308, %v810
      %v815 = vmul.f32 %v811, 0.33333334
      %v816 = vmul.f32 %v812, 0.33333334
      %v817 = vmul.f32 %v813, 0.33333334
      %v818 = vmul.f32 %v814, 0.33333334
      %819 = vrot.lane.b32.xlu0 %v815, 1
      %v820 = vpop.permute.xlu0 %819
      %821 = vrot.lane.b32.xlu0 %v816, 1
      %v822 = vpop.permute.xlu0 %821
      %823 = vrot.lane.b32.xlu0 %v817, 1
      %v824 = vpop.permute.xlu0 %823
      %825 = vrot.lane.b32.xlu0 %v818, 1
      %v826 = vpop.permute.xlu0 %825
      %v827 = vsel %vm325, %v824, %v826
      %v828 = vsel %vm325, %v822, %v824
      %v829 = vsel %vm325, %v820, %v822
      %v830 = vsel %vm325, %v826, %v820
      %v831 = vadd.f32 %v815, %v830
      %v832 = vadd.f32 %v816, %v829
      %v833 = vadd.f32 %v817, %v828
      %v834 = vadd.f32 %v818, %v827
      %835 = vrot.lane.b32.xlu0 %v831, 2
      %v836 = vpop.permute.xlu0 %835
      %837 = vrot.lane.b32.xlu0 %v832, 2
      %v838 = vpop.permute.xlu0 %837
      %839 = vrot.lane.b32.xlu0 %v833, 2
      %v840 = vpop.permute.xlu0 %839
      %841 = vrot.lane.b32.xlu0 %v834, 2
      %v842 = vpop.permute.xlu0 %841
      %v843 = vsel %vm342, %v840, %v842
      %v844 = vsel %vm342, %v838, %v840
      %v845 = vsel %vm342, %v836, %v838
      %v846 = vsel %vm342, %v842, %v836
      %v847 = vadd.f32 %v831, %v846
      %v848 = vadd.f32 %v832, %v845
      %v849 = vadd.f32 %v833, %v844
      %v850 = vadd.f32 %v834, %v843
      %v851 = vmax.f32 %v847, 0.0
      %v852 = vmax.f32 %v848, 0.0
      %v853 = vmax.f32 %v849, 0.0
      %v854 = vmax.f32 %v850, 0.0
      %855 = vrot.lane.b32.xlu0 %v791, 1
      %v856 = vpop.permute.xlu0 %855
      %857 = vrot.lane.b32.xlu0 %v792, 1
      %v858 = vpop.permute.xlu0 %857
      %859 = vrot.lane.b32.xlu0 %v793, 1
      %v860 = vpop.permute.xlu0 %859
      %861 = vrot.lane.b32.xlu0 %v794, 1
      %v862 = vpop.permute.xlu0 %861
      %v863 = vsel %vm325, %v860, %v862
      %v864 = vsel %vm325, %v858, %v860
      %v865 = vsel %vm325, %v856, %v858
      %v866 = vsel %vm325, %v862, %v856
      %v867 = vadd.f32 %v791, %v866
      %v868 = vadd.f32 %v792, %v865
      %v869 = vadd.f32 %v793, %v864
      %v870 = vadd.f32 %v794, %v863
      %871 = vrot.lane.b32.xlu0 %v867, 2
      %v872 = vpop.permute.xlu0 %871
      %873 = vrot.lane.b32.xlu0 %v868, 2
      %v874 = vpop.permute.xlu0 %873
      %875 = vrot.lane.b32.xlu0 %v869, 2
      %v876 = vpop.permute.xlu0 %875
      %877 = vrot.lane.b32.xlu0 %v870, 2
      %v878 = vpop.permute.xlu0 %877
      %v879 = vsel %vm342, %v876, %v878
      %v880 = vsel %vm342, %v874, %v876
      %v881 = vsel %vm342, %v872, %v874
      %v882 = vsel %vm342, %v878, %v872
      %v883 = vadd.f32 %v867, %v882
      %v884 = vadd.f32 %v868, %v881
      %v885 = vadd.f32 %v869, %v880
      %v886 = vadd.f32 %v870, %v879
      %v887 = vrsqrt.pop %v851
      %v888 = vmul.f32 %v851, %v887
      %vm889 = vcmp.eq.f32.partialorder %v851, inf
      %v890 = vsel %vm889, %v851, %v888
      %vm891 = vcmp.eq.f32.partialorder %v851, 0.0
      %v892 = vand.u32 %v851, 2147483648
      %v893 = vsel %vm891, %v892, %v890
      %v894 = vrsqrt.pop %v852
      %v895 = vmul.f32 %v852, %v894
      %vm896 = vcmp.eq.f32.partialorder %v852, inf
      %v897 = vsel %vm896, %v852, %v895
      %vm898 = vcmp.eq.f32.partialorder %v852, 0.0
      %v899 = vand.u32 %v852, 2147483648
      %v900 = vsel %vm898, %v899, %v897
      %v901 = vrsqrt.pop %v853
      %v902 = vmul.f32 %v853, %v901
      %vm903 = vcmp.eq.f32.partialorder %v853, inf
      %v904 = vsel %vm903, %v853, %v902
      %vm905 = vcmp.eq.f32.partialorder %v853, 0.0
      %v906 = vand.u32 %v853, 2147483648
      %v907 = vsel %vm905, %v906, %v904
      %v908 = vrsqrt.pop %v854
      %v909 = vmul.f32 %v854, %v908
      %vm910 = vcmp.eq.f32.partialorder %v854, inf
      %v911 = vsel %vm910, %v854, %v909
      %vm912 = vcmp.eq.f32.partialorder %v854, 0.0
      %v913 = vand.u32 %v854, 2147483648
      %v914 = vsel %vm912, %v913, %v911
      %v915 = vadd.f32 %v893, 1e-06
      %v916 = vadd.f32 %v900, 1e-06
      %v917 = vadd.f32 %v907, 1e-06
      %v918 = vadd.f32 %v914, 1e-06
      %v919 = vlog2.pop %v915
      %v920 = vmul.f32 %v919, 0.6931472
      %v921 = vlog2.pop %v916
      %v922 = vmul.f32 %v921, 0.6931472
      %v923 = vlog2.pop %v917
      %v924 = vmul.f32 %v923, 0.6931472
      %v925 = vlog2.pop %v918
      %v926 = vmul.f32 %v925, 0.6931472
      %v927 = vmul.f32 %v851, 2.0
      %v928 = vmul.f32 %v852, 2.0
      %v929 = vmul.f32 %v853, 2.0
      %v930 = vmul.f32 %v854, 2.0
      %v931 = vadd.f32 %v927, 1e-06
      %v932 = vadd.f32 %v928, 1e-06
      %v933 = vadd.f32 %v929, 1e-06
      %v934 = vadd.f32 %v930, 1e-06
      %v935 = vrcp.pop %v931
      %v936 = vrcp.pop %v932
      %v937 = vrcp.pop %v933
      %v938 = vrcp.pop %v934
      %v939 = vmul.f32 %v883, %v935
      %v940 = vmul.f32 %v884, %v936
      %v941 = vmul.f32 %v885, %v937
      %v942 = vmul.f32 %v886, %v938
      %v943 = vadd.f32 %v920, %v939
      %v944 = vadd.f32 %v922, %v940
      %v945 = vadd.f32 %v924, %v941
      %v946 = vadd.f32 %v926, %v942
      %v947 = vld [vmem:[#allocation4] sm:$0xff]
      %v948 = vld [vmem:[#allocation4 + $0x8] sm:$0xff]
      %v949 = vld [vmem:[#allocation4 + $0x10] sm:$0xff]
      %v950 = vld [vmem:[#allocation4 + $0x18] sm:$0xff]
      %v951 = vsel %vm132, %v943, 0.0
      %v952 = vsel %vm133, %v944, 0.0
      %v953 = vsel %vm134, %v945, 0.0
      %v954 = vsel %vm135, %v946, 0.0
      %v955 = vadd.f32 %v947, %v951
      %v956 = vadd.f32 %v948, %v952
      %v957 = vadd.f32 %v949, %v953
      %v958 = vadd.f32 %v950, %v954
      %959 = vst [vmem:[#allocation4] sm:$0xff] %v955
      %960 = vst [vmem:[#allocation4 + $0x8] sm:$0xff] %v956
      %961 = vst [vmem:[#allocation4 + $0x10] sm:$0xff] %v957
      %962 = vst [vmem:[#allocation4 + $0x18] sm:$0xff] %v958
    $region26: #{tpu_custom_call.1} parent=1 // loop_footer
      %s141 = sadd.s32 1, %s137
    $region27: #{tpu_custom_call.1} parent=1 // loop_footer_branch
      %136 = sbr.rel target = $region23
    $region28: #{tpu_custom_call.1} parent=1 // loop_exit
      _
    // Predicated region
    $region29: #{tpu_custom_call.1} parent=1 // pred_check
      %p963 = pneg %p41
    $region30: #{tpu_custom_call.1} parent=1 // pred_check_branch
      %965 = sbr.rel (%p963) target = $region32
    $region31: #{tpu_custom_call.1} parent=1 // pred_region
      %v966 = vld [vmem:[#allocation2] sm:$0xff]
      %v967 = vld [vmem:[#allocation2 + $0x8] sm:$0xff]
      %v968 = vld [vmem:[#allocation2 + $0x10] sm:$0xff]
      %v969 = vld [vmem:[#allocation2 + $0x18] sm:$0xff]
      %v970 = vadd.f32 %v966, %v967
      %v971 = vadd.f32 %v970, %v968
      %v972 = vadd.f32 %v971, %v969
      %973 = vadd.xlane.f32.xlu0 %v972
      %v974 = vpop.xlane.xlu0 %973
      %v975 = vrot.slane %v974, 4
      %v976 = vadd.f32 %v974, %v975
      %v977 = vrot.slane %v976, 2
      %v978 = vadd.f32 %v976, %v977
      %v979 = vrot.slane %v978, 1
      %v980 = vadd.f32 %v978, %v979
      %s981 = vtos %v980
      %s982 = smul.f32 %s981, 0.00012207031
      %s983 = scalar_lea.smem [#allocation12], 0
      %984 = sst [smem:[%s983]] %s982
      %s985 = scalar_lea.vmem [#allocation2], 32
      %v986 = vld [vmem:[%s985] sm:$0xff]
      %v987 = vld [vmem:[%s985 + $0x8] sm:$0xff]
      %v988 = vld [vmem:[%s985 + $0x10] sm:$0xff]
      %v989 = vld [vmem:[%s985 + $0x18] sm:$0xff]
      %v990 = vadd.f32 %v986, %v987
      %v991 = vadd.f32 %v990, %v988
      %v992 = vadd.f32 %v991, %v989
      %993 = vadd.xlane.f32.xlu0 %v992
      %v994 = vpop.xlane.xlu0 %993
      %v995 = vrot.slane %v994, 4
      %v996 = vadd.f32 %v994, %v995
      %v997 = vrot.slane %v996, 2
      %v998 = vadd.f32 %v996, %v997
      %v999 = vrot.slane %v998, 1
      %v1000 = vadd.f32 %v998, %v999
      %s1001 = vtos %v1000
      %s1002 = smul.f32 %s1001, 0.00012207031
      %s1003 = scalar_lea.smem [#allocation12], 1
      %1004 = sst [smem:[%s1003]] %s1002
      %s1005 = scalar_lea.vmem [#allocation2], 64
      %v1006 = vld [vmem:[%s1005] sm:$0xff]
      %v1007 = vld [vmem:[%s1005 + $0x8] sm:$0xff]
      %v1008 = vld [vmem:[%s1005 + $0x10] sm:$0xff]
      %v1009 = vld [vmem:[%s1005 + $0x18] sm:$0xff]
      %v1010 = vadd.f32 %v1006, %v1007
      %v1011 = vadd.f32 %v1010, %v1008
      %v1012 = vadd.f32 %v1011, %v1009
      %1013 = vadd.xlane.f32.xlu0 %v1012
      %v1014 = vpop.xlane.xlu0 %1013
      %v1015 = vrot.slane %v1014, 4
      %v1016 = vadd.f32 %v1014, %v1015
      %v1017 = vrot.slane %v1016, 2
      %v1018 = vadd.f32 %v1016, %v1017
      %v1019 = vrot.slane %v1018, 1
      %v1020 = vadd.f32 %v1018, %v1019
      %s1021 = vtos %v1020
      %s1022 = smul.f32 %s1021, 0.00012207031
      %s1023 = scalar_lea.smem [#allocation12], 2
      %1024 = sst [smem:[%s1023]] %s1022
      %s1025 = scalar_lea.vmem [#allocation2], 96
      %v1026 = vld [vmem:[%s1025] sm:$0xff]
      %v1027 = vld [vmem:[%s1025 + $0x8] sm:$0xff]
      %v1028 = vld [vmem:[%s1025 + $0x10] sm:$0xff]
      %v1029 = vld [vmem:[%s1025 + $0x18] sm:$0xff]
      %v1030 = vadd.f32 %v1026, %v1027
      %v1031 = vadd.f32 %v1030, %v1028
      %v1032 = vadd.f32 %v1031, %v1029
      %1033 = vadd.xlane.f32.xlu0 %v1032
      %v1034 = vpop.xlane.xlu0 %1033
      %v1035 = vrot.slane %v1034, 4
      %v1036 = vadd.f32 %v1034, %v1035
      %v1037 = vrot.slane %v1036, 2
      %v1038 = vadd.f32 %v1036, %v1037
      %v1039 = vrot.slane %v1038, 1
      %v1040 = vadd.f32 %v1038, %v1039
      %s1041 = vtos %v1040
      %s1042 = smul.f32 %s1041, 0.00012207031
      %s1043 = scalar_lea.smem [#allocation12], 3
      %1044 = sst [smem:[%s1043]] %s1042
      %v1045 = vld [vmem:[#allocation3] sm:$0xff]
      %v1046 = vld [vmem:[#allocation3 + $0x8] sm:$0xff]
      %v1047 = vld [vmem:[#allocation3 + $0x10] sm:$0xff]
      %v1048 = vld [vmem:[#allocation3 + $0x18] sm:$0xff]
      %v1049 = vadd.f32 %v1045, %v1046
      %v1050 = vadd.f32 %v1049, %v1047
      %v1051 = vadd.f32 %v1050, %v1048
      %1052 = vadd.xlane.f32.xlu0 %v1051
      %v1053 = vpop.xlane.xlu0 %1052
      %v1054 = vrot.slane %v1053, 4
      %v1055 = vadd.f32 %v1053, %v1054
      %v1056 = vrot.slane %v1055, 2
      %v1057 = vadd.f32 %v1055, %v1056
      %v1058 = vrot.slane %v1057, 1
      %v1059 = vadd.f32 %v1057, %v1058
      %s1060 = vtos %v1059
      %s1061 = smul.f32 %s1060, 0.00012207031
      %v1062 = vld [vmem:[#allocation4] sm:$0xff]
      %v1063 = vld [vmem:[#allocation4 + $0x8] sm:$0xff]
      %v1064 = vld [vmem:[#allocation4 + $0x10] sm:$0xff]
      %v1065 = vld [vmem:[#allocation4 + $0x18] sm:$0xff]
      %v1066 = vadd.f32 %v1062, %v1063
      %v1067 = vadd.f32 %v1066, %v1064
      %v1068 = vadd.f32 %v1067, %v1065
      %1069 = vadd.xlane.f32.xlu0 %v1068
      %v1070 = vpop.xlane.xlu0 %1069
      %v1071 = vrot.slane %v1070, 4
      %v1072 = vadd.f32 %v1070, %v1071
      %v1073 = vrot.slane %v1072, 2
      %v1074 = vadd.f32 %v1072, %v1073
      %v1075 = vrot.slane %v1074, 1
      %v1076 = vadd.f32 %v1074, %v1075
      %s1077 = vtos %v1076
      %s1078 = smul.f32 %s1077, 0.00048828125
      %v1079 = vld [vmem:[#allocation5] sm:$0xff]
      %v1080 = vld [vmem:[#allocation5 + $0x8] sm:$0xff]
      %v1081 = vld [vmem:[#allocation5 + $0x10] sm:$0xff]
      %v1082 = vld [vmem:[#allocation5 + $0x18] sm:$0xff]
      %v1083 = vadd.f32 %v1079, %v1080
      %v1084 = vadd.f32 %v1083, %v1081
      %v1085 = vadd.f32 %v1084, %v1082
      %1086 = vadd.xlane.f32.xlu0 %v1085
      %v1087 = vpop.xlane.xlu0 %1086
      %v1088 = vrot.slane %v1087, 4
      %v1089 = vadd.f32 %v1087, %v1088
      %v1090 = vrot.slane %v1089, 2
      %v1091 = vadd.f32 %v1089, %v1090
      %v1092 = vrot.slane %v1091, 1
      %v1093 = vadd.f32 %v1091, %v1092
      %s1094 = vtos %v1093
      %s1095 = smul.f32 %s1094, 8.138021e-05
      %s1096 = ssub.f32 0.0, %s1095
      %s1097 = scalar_lea.smem [#allocation11], 1
      %1098 = sst [smem:[%s1097]] %s1061
      %s1099 = scalar_lea.smem [#allocation11], 2
      %1100 = sst [smem:[%s1099]] %s1078
      %s1101 = scalar_lea.smem [#allocation11], 3
      %1102 = sst [smem:[%s1101]] %s1096
      %s1103 = smul.f32 %s1078, 0.1
      %s1104 = sadd.f32 %s1061, %s1103
      %s1105 = smul.f32 %s1096, 0.05
      %s1106 = sadd.f32 %s1104, %s1105
      %s1107 = scalar_lea.smem [#allocation11], 0
      %1108 = sst [smem:[%s1107]] %s1106
    $region32: #{tpu_custom_call.1} parent=1 // pred_fallthru
      _
    // Predicated region
    $region33: #{tpu_custom_call.1} parent=1 // pred_check
      _
    $region34: #{tpu_custom_call.1} parent=1 // pred_check_branch
      %1110 = sbr.rel (0) target = $region36
    $region35: #{tpu_custom_call.1} parent=1 // pred_region
      %s1112 = ssub.s32 16, 16
      %1113 = vsyncadd [#allocation8], %s1112
      %1116 = dma.smem_to_hbm [#allocation11], 16, %s2, [#allocation8]
    $region36: #{tpu_custom_call.1} parent=1 // pred_fallthru
      _
    // Predicated region
    $region37: #{tpu_custom_call.1} parent=1 // pred_check
      _
    $region38: #{tpu_custom_call.1} parent=1 // pred_check_branch
      %1118 = sbr.rel (0) target = $region40
    $region39: #{tpu_custom_call.1} parent=1 // pred_region
      %s1120 = ssub.s32 16, 16
      %1121 = vsyncadd [#allocation13], %s1120
      %1124 = dma.smem_to_hbm [#allocation12], 16, %s3, [#allocation13]
    $region40: #{tpu_custom_call.1} parent=1 // pred_fallthru
      _
    // Predicated region
    $region41: #{tpu_custom_call.1} parent=1 // pred_check
      _
    $region42: #{tpu_custom_call.1} parent=1 // pred_check_branch
      %1126 = sbr.rel (0) target = $region44
    $region43: #{tpu_custom_call.1} parent=1 // pred_region
      %1127 = dma.done [#allocation8], 16
    $region44: #{tpu_custom_call.1} parent=1 // pred_fallthru
      _
    // Predicated region
    $region45: #{tpu_custom_call.1} parent=1 // pred_check
      _
    $region46: #{tpu_custom_call.1} parent=1 // pred_check_branch
      %1129 = sbr.rel (0) target = $region48
    $region47: #{tpu_custom_call.1} parent=1 // pred_region
      %1130 = dma.done [#allocation13], 16
    $region48: #{tpu_custom_call.1} parent=1 // pred_fallthru
      _
    %1131 = sfence
    %1132 = vsyncpa [#allocation7], 1
    %1133 = vsyncpa [#allocation10], 1
    %1134 = vsyncpa [#allocation8], 1
    %1135 = vsyncpa [#allocation13], 1

</llo_original>
